<compile_context>
chip_gen: v6e
topology: v6e:2x2x1
jax: 0.10.0
libtpu: 0.0.40
codegen_flags: <defaults>
</compile_context>

<pallas_src>
import jax
import jax.numpy as jnp
from jax.experimental import pallas as pl
from jax.experimental.pallas import tpu as pltpu

_H1 = 16          # hidden_dim_1
_H2 = 16          # hidden_dim_2
# Packed-parameter layout (a (344, 1) f32 column vector):
_OFF_W1 = 0                     # [0,32)   : W1^T columns (16 for in-feat 0, 16 for in-feat 1)
_OFF_B1 = _OFF_W1 + 2 * _H1     # [32,48)  : b1
_OFF_W2 = _OFF_B1 + _H1         # [48,304) : W2^T columns, chunk k = W2[k, :]
_OFF_B2 = _OFF_W2 + _H1 * _H2   # [304,320): b2
_OFF_W3 = _OFF_B2 + _H2         # [320,336): W3[:, 0]
_OFF_B3 = _OFF_W3 + _H2         # [336,337): b3
_PACKED_LEN = 344               # 337 rounded up to a multiple of 8 sublanes


def _round_up(n, m):
    return ((n + m - 1) // m) * m


def _mlp_kernel(x_ref, p_ref, o_ref, h_ref):
    """x_ref: (6, TB); p_ref: (344, 1); o_ref: (3, TB); h_ref: (16, TB) scratch."""
    tb = x_ref.shape[1]

    # Hoist parameter loads (each a (16,1) sublane vector, lane-broadcastable).
    w1c0 = p_ref[_OFF_W1:_OFF_W1 + _H1, :]
    w1c1 = p_ref[_OFF_W1 + _H1:_OFF_W1 + 2 * _H1, :]
    b1 = p_ref[_OFF_B1:_OFF_B1 + _H1, :]
    b2 = p_ref[_OFF_B2:_OFF_B2 + _H2, :]
    w3 = p_ref[_OFF_W3:_OFF_W3 + _H2, :]
    b3 = p_ref[_OFF_B3:_OFF_B3 + 1, :]
    b2_full = jnp.broadcast_to(b2, (_H2, tb))   # hoisted bias broadcast

    # Same block (block1) applied to the 3 column pairs (r, r+3).
    for r in range(3):
        in0 = x_ref[r:r + 1, :]                  # (1, TB)
        in1 = x_ref[r + 3:r + 4, :]              # (1, TB)

        # fc1 + ReLU: 2 broadcast FMAs on the VPU -> (16, TB)
        h1 = jnp.maximum(w1c0 * in0 + w1c1 * in1 + b1, 0.0)
        h_ref[...] = h1                          # stage in VMEM for row access

        # fc2 + ReLU: 16 broadcast FMAs
        acc = b2_full
        for k in range(_H1):
            wk = p_ref[_OFF_W2 + k * _H2:_OFF_W2 + (k + 1) * _H2, :]  # (16,1)
            acc = acc + wk * h_ref[k:k + 1, :]
        h2 = jnp.maximum(acc, 0.0)               # (16, TB)

        # fc3: scale + sublane reduce -> (1, TB), lane-dense store
        out_r = jnp.sum(w3 * h2, axis=0, keepdims=True) + b3
        o_ref[r:r + 1, :] = out_r


def pack_params(params):
    """Pack block1's 6 tensors into one (344, 1) f32 buffer (single DMA)."""
    w1 = params["w1"]                       # (2, 16)   stored (in, out)
    w2 = params["w2"]                       # (16, 16)
    w3 = params["w3"]                       # (16, 1)
    parts = [
        w1[0].reshape(-1),                  # W1^T column for input feature 0
        w1[1].reshape(-1),                  # W1^T column for input feature 1
        params["b1"].reshape(-1),
        w2.reshape(-1),                     # row-major: chunk k == W2[k, :]
        params["b2"].reshape(-1),
        w3.reshape(-1),
        params["b3"].reshape(-1),
        jnp.zeros((_PACKED_LEN - 337,), jnp.float32),
    ]
    return jnp.concatenate(parts, axis=0).reshape(_PACKED_LEN, 1)


def splitted_model2_forward(x, params):
    """Equivalent of SplittedModel2.forward for x of shape (B, >=6) -> (B, 3)."""
    B = x.shape[0]
    packed = pack_params(params)

    # Single layout op instead of 3 gathers + concat: feature-major input.
    xt = jnp.transpose(x[:, :6].astype(jnp.float32))     # (6, B)

    # Batch tile: lane-dense, multiple of 128; cap to keep VMEM use tiny even
    # on v7x's 64 MiB parts.
    if B <= 2048:
        tb = _round_up(max(B, 1), 128)
    else:
        tb = 2048
    b_pad = _round_up(B, tb)
    if b_pad != B:
        xt = jnp.pad(xt, ((0, 0), (0, b_pad - B)))

    flops = 3 * b_pad * (2 * 2 * _H1 + 2 * _H1 * _H2 + 2 * _H2)
    bytes_accessed = 4 * (6 * b_pad + 3 * b_pad) + 4 * _PACKED_LEN

    out_t = pl.pallas_call(
        _mlp_kernel,
        out_shape=jax.ShapeDtypeStruct((3, b_pad), jnp.float32),
        grid_spec=pltpu.PrefetchScalarGridSpec(
            num_scalar_prefetch=0,
            grid=(b_pad // tb,),
            in_specs=[
                pl.BlockSpec((6, tb), lambda i: (0, i)),          # activations
                pl.BlockSpec((_PACKED_LEN, 1), lambda i: (0, 0)), # params, resident
            ],
            out_specs=pl.BlockSpec((3, tb), lambda i: (0, i)),
            scratch_shapes=[pltpu.VMEM((_H1, tb), jnp.float32)],
        ),
        compiler_params=pltpu.CompilerParams(
            dimension_semantics=("parallel",),       # shard batch over TCs (v7x)
            vmem_limit_bytes=32 * 1024 * 1024,
        ),
        cost_estimate=pl.CostEstimate(
            flops=flops, transcendentals=0, bytes_accessed=bytes_accessed),
    )(xt, packed)

    # (3, B) lane-dense kernel output -> (B, 3) == torch.cat((u1, u2, u3), dim=1)
    return jnp.transpose(out_t[:, :B])


def init_params(key, input_dim=2, output_dim=1, hidden_dim_1=16, hidden_dim_2=16):
    """Deterministic init for block1's three Linear layers (stored (in, out))."""
    ks = jax.random.split(key, 6)

    def lin(kw, kb, fan_in, fan_out):
        bound = 1.0 / jnp.sqrt(fan_in)
        w = jax.random.uniform(kw, (fan_in, fan_out), jnp.float32, -bound, bound)
        b = jax.random.uniform(kb, (1, fan_out), jnp.float32, -bound, bound)
        return w, b

    w1, b1 = lin(ks[0], ks[1], input_dim, hidden_dim_1)
    w2, b2 = lin(ks[2], ks[3], hidden_dim_1, hidden_dim_2)
    w3, b3 = lin(ks[4], ks[5], hidden_dim_2, output_dim)
    return {"w1": w1, "b1": b1, "w2": w2, "b2": b2, "w3": w3, "b3": b3}


if __name__ == "__main__":
    key = jax.random.PRNGKey(0)
    k_param, k_x = jax.random.split(key)

    B = 8
    x = jax.random.normal(k_x, (B, 6), dtype=jnp.float32)
    params = init_params(k_param)

    fwd = jax.jit(splitted_model2_forward)
    out = jax.block_until_ready(fwd(x, params))

    # Pure-JAX reference (same math as the PyTorch module: block1 for all three).
    def ref(x, p):
        def block(xi):
            h = jnp.maximum(xi @ p["w1"] + p["b1"], 0.0)
            h = jnp.maximum(h @ p["w2"] + p["b2"], 0.0)
            return h @ p["w3"] + p["b3"]
        u1 = block(x[:, jnp.array([0, 3])])
        u2 = block(x[:, jnp.array([1, 4])])
        u3 = block(x[:, jnp.array([2, 5])])
        return jnp.concatenate([u1, u2, u3], axis=1)

    expected = ref(x, params)
    assert out.shape == (B, 3), out.shape
    assert jnp.allclose(out, expected, atol=1e-5, rtol=1e-5), (
        float(jnp.max(jnp.abs(out - expected))))
    print("KERNEL_OK")
</pallas_src>

<mosaic_0001>
module attributes {stable_mosaic.version = 11 : i64} {
  func.func @_mlp_kernel(%arg0: i32, %arg1: memref<6x128xf32, #tpu.memory_space<vmem>>, %arg2: memref<344x1xf32, #tpu.memory_space<vmem>>, %arg3: memref<3x128xf32, #tpu.memory_space<vmem>>, %arg4: memref<16x128xf32, #tpu.memory_space<vmem>>) attributes {dimension_semantics = [#tpu.dimension_semantics<parallel>], iteration_bounds = array<i64: 1>, scalar_prefetch = 0 : i64, scratch_operands = 1 : i64, tpu.core_type = #tpu.core_type<tc>, window_params = [{transform_indices = @transform_0, window_bounds = array<i64: 6, 128>}, {pipeline_mode = #tpu.pipeline_mode<synchronous>, transform_indices = @transform_1, window_bounds = array<i64: 344, 1>}, {transform_indices = @transform_2, window_bounds = array<i64: 3, 128>}]} {
    %c0 = arith.constant 0 : index
    %c0_0 = arith.constant 0 : index
    %0 = vector.load %arg2[%c0, %c0_0] : memref<344x1xf32, #tpu.memory_space<vmem>>, vector<16x1xf32>
    %c16 = arith.constant 16 : index
    %c0_1 = arith.constant 0 : index
    %1 = vector.load %arg2[%c16, %c0_1] : memref<344x1xf32, #tpu.memory_space<vmem>>, vector<16x1xf32>
    %c32 = arith.constant 32 : index
    %c0_2 = arith.constant 0 : index
    %2 = vector.load %arg2[%c32, %c0_2] : memref<344x1xf32, #tpu.memory_space<vmem>>, vector<16x1xf32>
    %c304 = arith.constant 304 : index
    %c0_3 = arith.constant 0 : index
    %3 = vector.load %arg2[%c304, %c0_3] : memref<344x1xf32, #tpu.memory_space<vmem>>, vector<16x1xf32>
    %c320 = arith.constant 320 : index
    %c0_4 = arith.constant 0 : index
    %4 = vector.load %arg2[%c320, %c0_4] : memref<344x1xf32, #tpu.memory_space<vmem>>, vector<16x1xf32>
    %c336 = arith.constant 336 : index
    %c0_5 = arith.constant 0 : index
    %5 = vector.load %arg2[%c336, %c0_5] : memref<344x1xf32, #tpu.memory_space<vmem>>, vector<1x1xf32>
    %6 = vector.shape_cast %3 : vector<16x1xf32> to vector<16x1xf32>
    %7 = vector.broadcast %6 : vector<16x1xf32> to vector<16x128xf32>
    %c0_6 = arith.constant 0 : index
    %c0_7 = arith.constant 0 : index
    %8 = vector.load %arg1[%c0_6, %c0_7] : memref<6x128xf32, #tpu.memory_space<vmem>>, vector<1x128xf32>
    %c3 = arith.constant 3 : index
    %c0_8 = arith.constant 0 : index
    %9 = vector.load %arg1[%c3, %c0_8] : memref<6x128xf32, #tpu.memory_space<vmem>>, vector<1x128xf32>
    %10 = vector.broadcast %0 : vector<16x1xf32> to vector<16x128xf32>
    %11 = vector.broadcast %8 : vector<1x128xf32> to vector<16x128xf32>
    %12 = arith.mulf %10, %11 : vector<16x128xf32>
    %13 = vector.broadcast %1 : vector<16x1xf32> to vector<16x128xf32>
    %14 = vector.broadcast %9 : vector<1x128xf32> to vector<16x128xf32>
    %15 = arith.mulf %13, %14 : vector<16x128xf32>
    %16 = arith.addf %12, %15 : vector<16x128xf32>
    %17 = vector.broadcast %2 : vector<16x1xf32> to vector<16x128xf32>
    %18 = arith.addf %16, %17 : vector<16x128xf32>
    %cst = arith.constant 0.000000e+00 : f32
    %19 = vector.broadcast %cst : f32 to vector<16x128xf32>
    %20 = arith.maximumf %18, %19 : vector<16x128xf32>
    %c0_9 = arith.constant 0 : index
    %c0_10 = arith.constant 0 : index
    %21 = vector.load %arg4[%c0_9, %c0_10] : memref<16x128xf32, #tpu.memory_space<vmem>>, vector<16x128xf32>
    tpu.vector_store %arg4[%c0_9, %c0_10], %20 {strides = array<i32>} : memref<16x128xf32, #tpu.memory_space<vmem>>, vector<16x128xf32>,
    %c48 = arith.constant 48 : index
    %c0_11 = arith.constant 0 : index
    %22 = vector.load %arg2[%c48, %c0_11] : memref<344x1xf32, #tpu.memory_space<vmem>>, vector<16x1xf32>
    %c0_12 = arith.constant 0 : index
    %c0_13 = arith.constant 0 : index
    %23 = vector.load %arg4[%c0_12, %c0_13] : memref<16x128xf32, #tpu.memory_space<vmem>>, vector<1x128xf32>
    %24 = vector.broadcast %22 : vector<16x1xf32> to vector<16x128xf32>
    %25 = vector.broadcast %23 : vector<1x128xf32> to vector<16x128xf32>
    %26 = arith.mulf %24, %25 : vector<16x128xf32>
    %27 = arith.addf %7, %26 : vector<16x128xf32>
    %c64 = arith.constant 64 : index
    %c0_14 = arith.constant 0 : index
    %28 = vector.load %arg2[%c64, %c0_14] : memref<344x1xf32, #tpu.memory_space<vmem>>, vector<16x1xf32>
    %c1 = arith.constant 1 : index
    %c0_15 = arith.constant 0 : index
    %29 = vector.load %arg4[%c1, %c0_15] : memref<16x128xf32, #tpu.memory_space<vmem>>, vector<1x128xf32>
    %30 = vector.broadcast %28 : vector<16x1xf32> to vector<16x128xf32>
    %31 = vector.broadcast %29 : vector<1x128xf32> to vector<16x128xf32>
    %32 = arith.mulf %30, %31 : vector<16x128xf32>
    %33 = arith.addf %27, %32 : vector<16x128xf32>
    %c80 = arith.constant 80 : index
    %c0_16 = arith.constant 0 : index
    %34 = vector.load %arg2[%c80, %c0_16] : memref<344x1xf32, #tpu.memory_space<vmem>>, vector<16x1xf32>
    %c2 = arith.constant 2 : index
    %c0_17 = arith.constant 0 : index
    %35 = vector.load %arg4[%c2, %c0_17] : memref<16x128xf32, #tpu.memory_space<vmem>>, vector<1x128xf32>
    %36 = vector.broadcast %34 : vector<16x1xf32> to vector<16x128xf32>
    %37 = vector.broadcast %35 : vector<1x128xf32> to vector<16x128xf32>
    %38 = arith.mulf %36, %37 : vector<16x128xf32>
    %39 = arith.addf %33, %38 : vector<16x128xf32>
    %c96 = arith.constant 96 : index
    %c0_18 = arith.constant 0 : index
    %40 = vector.load %arg2[%c96, %c0_18] : memref<344x1xf32, #tpu.memory_space<vmem>>, vector<16x1xf32>
    %c3_19 = arith.constant 3 : index
    %c0_20 = arith.constant 0 : index
    %41 = vector.load %arg4[%c3_19, %c0_20] : memref<16x128xf32, #tpu.memory_space<vmem>>, vector<1x128xf32>
    %42 = vector.broadcast %40 : vector<16x1xf32> to vector<16x128xf32>
    %43 = vector.broadcast %41 : vector<1x128xf32> to vector<16x128xf32>
    %44 = arith.mulf %42, %43 : vector<16x128xf32>
    %45 = arith.addf %39, %44 : vector<16x128xf32>
    %c112 = arith.constant 112 : index
    %c0_21 = arith.constant 0 : index
    %46 = vector.load %arg2[%c112, %c0_21] : memref<344x1xf32, #tpu.memory_space<vmem>>, vector<16x1xf32>
    %c4 = arith.constant 4 : index
    %c0_22 = arith.constant 0 : index
    %47 = vector.load %arg4[%c4, %c0_22] : memref<16x128xf32, #tpu.memory_space<vmem>>, vector<1x128xf32>
    %48 = vector.broadcast %46 : vector<16x1xf32> to vector<16x128xf32>
    %49 = vector.broadcast %47 : vector<1x128xf32> to vector<16x128xf32>
    %50 = arith.mulf %48, %49 : vector<16x128xf32>
    %51 = arith.addf %45, %50 : vector<16x128xf32>
    %c128 = arith.constant 128 : index
    %c0_23 = arith.constant 0 : index
    %52 = vector.load %arg2[%c128, %c0_23] : memref<344x1xf32, #tpu.memory_space<vmem>>, vector<16x1xf32>
    %c5 = arith.constant 5 : index
    %c0_24 = arith.constant 0 : index
    %53 = vector.load %arg4[%c5, %c0_24] : memref<16x128xf32, #tpu.memory_space<vmem>>, vector<1x128xf32>
    %54 = vector.broadcast %52 : vector<16x1xf32> to vector<16x128xf32>
    %55 = vector.broadcast %53 : vector<1x128xf32> to vector<16x128xf32>
    %56 = arith.mulf %54, %55 : vector<16x128xf32>
    %57 = arith.addf %51, %56 : vector<16x128xf32>
    %c144 = arith.constant 144 : index
    %c0_25 = arith.constant 0 : index
    %58 = vector.load %arg2[%c144, %c0_25] : memref<344x1xf32, #tpu.memory_space<vmem>>, vector<16x1xf32>
    %c6 = arith.constant 6 : index
    %c0_26 = arith.constant 0 : index
    %59 = vector.load %arg4[%c6, %c0_26] : memref<16x128xf32, #tpu.memory_space<vmem>>, vector<1x128xf32>
    %60 = vector.broadcast %58 : vector<16x1xf32> to vector<16x128xf32>
    %61 = vector.broadcast %59 : vector<1x128xf32> to vector<16x128xf32>
    %62 = arith.mulf %60, %61 : vector<16x128xf32>
    %63 = arith.addf %57, %62 : vector<16x128xf32>
    %c160 = arith.constant 160 : index
    %c0_27 = arith.constant 0 : index
    %64 = vector.load %arg2[%c160, %c0_27] : memref<344x1xf32, #tpu.memory_space<vmem>>, vector<16x1xf32>
    %c7 = arith.constant 7 : index
    %c0_28 = arith.constant 0 : index
    %65 = vector.load %arg4[%c7, %c0_28] : memref<16x128xf32, #tpu.memory_space<vmem>>, vector<1x128xf32>
    %66 = vector.broadcast %64 : vector<16x1xf32> to vector<16x128xf32>
    %67 = vector.broadcast %65 : vector<1x128xf32> to vector<16x128xf32>
    %68 = arith.mulf %66, %67 : vector<16x128xf32>
    %69 = arith.addf %63, %68 : vector<16x128xf32>
    %c176 = arith.constant 176 : index
    %c0_29 = arith.constant 0 : index
    %70 = vector.load %arg2[%c176, %c0_29] : memref<344x1xf32, #tpu.memory_space<vmem>>, vector<16x1xf32>
    %c8 = arith.constant 8 : index
    %c0_30 = arith.constant 0 : index
    %71 = vector.load %arg4[%c8, %c0_30] : memref<16x128xf32, #tpu.memory_space<vmem>>, vector<1x128xf32>
    %72 = vector.broadcast %70 : vector<16x1xf32> to vector<16x128xf32>
    %73 = vector.broadcast %71 : vector<1x128xf32> to vector<16x128xf32>
    %74 = arith.mulf %72, %73 : vector<16x128xf32>
    %75 = arith.addf %69, %74 : vector<16x128xf32>
    %c192 = arith.constant 192 : index
    %c0_31 = arith.constant 0 : index
    %76 = vector.load %arg2[%c192, %c0_31] : memref<344x1xf32, #tpu.memory_space<vmem>>, vector<16x1xf32>
    %c9 = arith.constant 9 : index
    %c0_32 = arith.constant 0 : index
    %77 = vector.load %arg4[%c9, %c0_32] : memref<16x128xf32, #tpu.memory_space<vmem>>, vector<1x128xf32>
    %78 = vector.broadcast %76 : vector<16x1xf32> to vector<16x128xf32>
    %79 = vector.broadcast %77 : vector<1x128xf32> to vector<16x128xf32>
    %80 = arith.mulf %78, %79 : vector<16x128xf32>
    %81 = arith.addf %75, %80 : vector<16x128xf32>
    %c208 = arith.constant 208 : index
    %c0_33 = arith.constant 0 : index
    %82 = vector.load %arg2[%c208, %c0_33] : memref<344x1xf32, #tpu.memory_space<vmem>>, vector<16x1xf32>
    %c10 = arith.constant 10 : index
    %c0_34 = arith.constant 0 : index
    %83 = vector.load %arg4[%c10, %c0_34] : memref<16x128xf32, #tpu.memory_space<vmem>>, vector<1x128xf32>
    %84 = vector.broadcast %82 : vector<16x1xf32> to vector<16x128xf32>
    %85 = vector.broadcast %83 : vector<1x128xf32> to vector<16x128xf32>
    %86 = arith.mulf %84, %85 : vector<16x128xf32>
    %87 = arith.addf %81, %86 : vector<16x128xf32>
    %c224 = arith.constant 224 : index
    %c0_35 = arith.constant 0 : index
    %88 = vector.load %arg2[%c224, %c0_35] : memref<344x1xf32, #tpu.memory_space<vmem>>, vector<16x1xf32>
    %c11 = arith.constant 11 : index
    %c0_36 = arith.constant 0 : index
    %89 = vector.load %arg4[%c11, %c0_36] : memref<16x128xf32, #tpu.memory_space<vmem>>, vector<1x128xf32>
    %90 = vector.broadcast %88 : vector<16x1xf32> to vector<16x128xf32>
    %91 = vector.broadcast %89 : vector<1x128xf32> to vector<16x128xf32>
    %92 = arith.mulf %90, %91 : vector<16x128xf32>
    %93 = arith.addf %87, %92 : vector<16x128xf32>
    %c240 = arith.constant 240 : index
    %c0_37 = arith.constant 0 : index
    %94 = vector.load %arg2[%c240, %c0_37] : memref<344x1xf32, #tpu.memory_space<vmem>>, vector<16x1xf32>
    %c12 = arith.constant 12 : index
    %c0_38 = arith.constant 0 : index
    %95 = vector.load %arg4[%c12, %c0_38] : memref<16x128xf32, #tpu.memory_space<vmem>>, vector<1x128xf32>
    %96 = vector.broadcast %94 : vector<16x1xf32> to vector<16x128xf32>
    %97 = vector.broadcast %95 : vector<1x128xf32> to vector<16x128xf32>
    %98 = arith.mulf %96, %97 : vector<16x128xf32>
    %99 = arith.addf %93, %98 : vector<16x128xf32>
    %c256 = arith.constant 256 : index
    %c0_39 = arith.constant 0 : index
    %100 = vector.load %arg2[%c256, %c0_39] : memref<344x1xf32, #tpu.memory_space<vmem>>, vector<16x1xf32>
    %c13 = arith.constant 13 : index
    %c0_40 = arith.constant 0 : index
    %101 = vector.load %arg4[%c13, %c0_40] : memref<16x128xf32, #tpu.memory_space<vmem>>, vector<1x128xf32>
    %102 = vector.broadcast %100 : vector<16x1xf32> to vector<16x128xf32>
    %103 = vector.broadcast %101 : vector<1x128xf32> to vector<16x128xf32>
    %104 = arith.mulf %102, %103 : vector<16x128xf32>
    %105 = arith.addf %99, %104 : vector<16x128xf32>
    %c272 = arith.constant 272 : index
    %c0_41 = arith.constant 0 : index
    %106 = vector.load %arg2[%c272, %c0_41] : memref<344x1xf32, #tpu.memory_space<vmem>>, vector<16x1xf32>
    %c14 = arith.constant 14 : index
    %c0_42 = arith.constant 0 : index
    %107 = vector.load %arg4[%c14, %c0_42] : memref<16x128xf32, #tpu.memory_space<vmem>>, vector<1x128xf32>
    %108 = vector.broadcast %106 : vector<16x1xf32> to vector<16x128xf32>
    %109 = vector.broadcast %107 : vector<1x128xf32> to vector<16x128xf32>
    %110 = arith.mulf %108, %109 : vector<16x128xf32>
    %111 = arith.addf %105, %110 : vector<16x128xf32>
    %c288 = arith.constant 288 : index
    %c0_43 = arith.constant 0 : index
    %112 = vector.load %arg2[%c288, %c0_43] : memref<344x1xf32, #tpu.memory_space<vmem>>, vector<16x1xf32>
    %c15 = arith.constant 15 : index
    %c0_44 = arith.constant 0 : index
    %113 = vector.load %arg4[%c15, %c0_44] : memref<16x128xf32, #tpu.memory_space<vmem>>, vector<1x128xf32>
    %114 = vector.broadcast %112 : vector<16x1xf32> to vector<16x128xf32>
    %115 = vector.broadcast %113 : vector<1x128xf32> to vector<16x128xf32>
    %116 = arith.mulf %114, %115 : vector<16x128xf32>
    %117 = arith.addf %111, %116 : vector<16x128xf32>
    %cst_45 = arith.constant 0.000000e+00 : f32
    %118 = vector.broadcast %cst_45 : f32 to vector<16x128xf32>
    %119 = arith.maximumf %117, %118 : vector<16x128xf32>
    %120 = vector.broadcast %4 : vector<16x1xf32> to vector<16x128xf32>
    %121 = arith.mulf %120, %119 : vector<16x128xf32>
    %cst_46 = arith.constant dense<0.000000e+00> : vector<128xf32>
    %122 = vector.multi_reduction <add>, %121, %cst_46 [0] : vector<16x128xf32> to vector<128xf32>
    %123 = vector.shape_cast %122 : vector<128xf32> to vector<1x128xf32>
    %124 = vector.broadcast %5 : vector<1x1xf32> to vector<1x128xf32>
    %125 = arith.addf %123, %124 : vector<1x128xf32>
    %c0_47 = arith.constant 0 : index
    %c0_48 = arith.constant 0 : index
    %126 = vector.load %arg3[%c0_47, %c0_48] : memref<3x128xf32, #tpu.memory_space<vmem>>, vector<1x128xf32>
    tpu.vector_store %arg3[%c0_47, %c0_48], %125 {strides = array<i32>} : memref<3x128xf32, #tpu.memory_space<vmem>>, vector<1x128xf32>,
    %c1_49 = arith.constant 1 : index
    %c0_50 = arith.constant 0 : index
    %127 = vector.load %arg1[%c1_49, %c0_50] : memref<6x128xf32, #tpu.memory_space<vmem>>, vector<1x128xf32>
    %c4_51 = arith.constant 4 : index
    %c0_52 = arith.constant 0 : index
    %128 = vector.load %arg1[%c4_51, %c0_52] : memref<6x128xf32, #tpu.memory_space<vmem>>, vector<1x128xf32>
    %129 = vector.broadcast %0 : vector<16x1xf32> to vector<16x128xf32>
    %130 = vector.broadcast %127 : vector<1x128xf32> to vector<16x128xf32>
    %131 = arith.mulf %129, %130 : vector<16x128xf32>
    %132 = vector.broadcast %1 : vector<16x1xf32> to vector<16x128xf32>
    %133 = vector.broadcast %128 : vector<1x128xf32> to vector<16x128xf32>
    %134 = arith.mulf %132, %133 : vector<16x128xf32>
    %135 = arith.addf %131, %134 : vector<16x128xf32>
    %136 = vector.broadcast %2 : vector<16x1xf32> to vector<16x128xf32>
    %137 = arith.addf %135, %136 : vector<16x128xf32>
    %cst_53 = arith.constant 0.000000e+00 : f32
    %138 = vector.broadcast %cst_53 : f32 to vector<16x128xf32>
    %139 = arith.maximumf %137, %138 : vector<16x128xf32>
    %c0_54 = arith.constant 0 : index
    %c0_55 = arith.constant 0 : index
    %140 = vector.load %arg4[%c0_54, %c0_55] : memref<16x128xf32, #tpu.memory_space<vmem>>, vector<16x128xf32>
    tpu.vector_store %arg4[%c0_54, %c0_55], %139 {strides = array<i32>} : memref<16x128xf32, #tpu.memory_space<vmem>>, vector<16x128xf32>,
    %c48_56 = arith.constant 48 : index
    %c0_57 = arith.constant 0 : index
    %141 = vector.load %arg2[%c48_56, %c0_57] : memref<344x1xf32, #tpu.memory_space<vmem>>, vector<16x1xf32>
    %c0_58 = arith.constant 0 : index
    %c0_59 = arith.constant 0 : index
    %142 = vector.load %arg4[%c0_58, %c0_59] : memref<16x128xf32, #tpu.memory_space<vmem>>, vector<1x128xf32>
    %143 = vector.broadcast %141 : vector<16x1xf32> to vector<16x128xf32>
    %144 = vector.broadcast %142 : vector<1x128xf32> to vector<16x128xf32>
    %145 = arith.mulf %143, %144 : vector<16x128xf32>
    %146 = arith.addf %7, %145 : vector<16x128xf32>
    %c64_60 = arith.constant 64 : index
    %c0_61 = arith.constant 0 : index
    %147 = vector.load %arg2[%c64_60, %c0_61] : memref<344x1xf32, #tpu.memory_space<vmem>>, vector<16x1xf32>
    %c1_62 = arith.constant 1 : index
    %c0_63 = arith.constant 0 : index
    %148 = vector.load %arg4[%c1_62, %c0_63] : memref<16x128xf32, #tpu.memory_space<vmem>>, vector<1x128xf32>
    %149 = vector.broadcast %147 : vector<16x1xf32> to vector<16x128xf32>
    %150 = vector.broadcast %148 : vector<1x128xf32> to vector<16x128xf32>
    %151 = arith.mulf %149, %150 : vector<16x128xf32>
    %152 = arith.addf %146, %151 : vector<16x128xf32>
    %c80_64 = arith.constant 80 : index
    %c0_65 = arith.constant 0 : index
    %153 = vector.load %arg2[%c80_64, %c0_65] : memref<344x1xf32, #tpu.memory_space<vmem>>, vector<16x1xf32>
    %c2_66 = arith.constant 2 : index
    %c0_67 = arith.constant 0 : index
    %154 = vector.load %arg4[%c2_66, %c0_67] : memref<16x128xf32, #tpu.memory_space<vmem>>, vector<1x128xf32>
    %155 = vector.broadcast %153 : vector<16x1xf32> to vector<16x128xf32>
    %156 = vector.broadcast %154 : vector<1x128xf32> to vector<16x128xf32>
    %157 = arith.mulf %155, %156 : vector<16x128xf32>
    %158 = arith.addf %152, %157 : vector<16x128xf32>
    %c96_68 = arith.constant 96 : index
    %c0_69 = arith.constant 0 : index
    %159 = vector.load %arg2[%c96_68, %c0_69] : memref<344x1xf32, #tpu.memory_space<vmem>>, vector<16x1xf32>
    %c3_70 = arith.constant 3 : index
    %c0_71 = arith.constant 0 : index
    %160 = vector.load %arg4[%c3_70, %c0_71] : memref<16x128xf32, #tpu.memory_space<vmem>>, vector<1x128xf32>
    %161 = vector.broadcast %159 : vector<16x1xf32> to vector<16x128xf32>
    %162 = vector.broadcast %160 : vector<1x128xf32> to vector<16x128xf32>
    %163 = arith.mulf %161, %162 : vector<16x128xf32>
    %164 = arith.addf %158, %163 : vector<16x128xf32>
    %c112_72 = arith.constant 112 : index
    %c0_73 = arith.constant 0 : index
    %165 = vector.load %arg2[%c112_72, %c0_73] : memref<344x1xf32, #tpu.memory_space<vmem>>, vector<16x1xf32>
    %c4_74 = arith.constant 4 : index
    %c0_75 = arith.constant 0 : index
    %166 = vector.load %arg4[%c4_74, %c0_75] : memref<16x128xf32, #tpu.memory_space<vmem>>, vector<1x128xf32>
    %167 = vector.broadcast %165 : vector<16x1xf32> to vector<16x128xf32>
    %168 = vector.broadcast %166 : vector<1x128xf32> to vector<16x128xf32>
    %169 = arith.mulf %167, %168 : vector<16x128xf32>
    %170 = arith.addf %164, %169 : vector<16x128xf32>
    %c128_76 = arith.constant 128 : index
    %c0_77 = arith.constant 0 : index
    %171 = vector.load %arg2[%c128_76, %c0_77] : memref<344x1xf32, #tpu.memory_space<vmem>>, vector<16x1xf32>
    %c5_78 = arith.constant 5 : index
    %c0_79 = arith.constant 0 : index
    %172 = vector.load %arg4[%c5_78, %c0_79] : memref<16x128xf32, #tpu.memory_space<vmem>>, vector<1x128xf32>
    %173 = vector.broadcast %171 : vector<16x1xf32> to vector<16x128xf32>
    %174 = vector.broadcast %172 : vector<1x128xf32> to vector<16x128xf32>
    %175 = arith.mulf %173, %174 : vector<16x128xf32>
    %176 = arith.addf %170, %175 : vector<16x128xf32>
    %c144_80 = arith.constant 144 : index
    %c0_81 = arith.constant 0 : index
    %177 = vector.load %arg2[%c144_80, %c0_81] : memref<344x1xf32, #tpu.memory_space<vmem>>, vector<16x1xf32>
    %c6_82 = arith.constant 6 : index
    %c0_83 = arith.constant 0 : index
    %178 = vector.load %arg4[%c6_82, %c0_83] : memref<16x128xf32, #tpu.memory_space<vmem>>, vector<1x128xf32>
    %179 = vector.broadcast %177 : vector<16x1xf32> to vector<16x128xf32>
    %180 = vector.broadcast %178 : vector<1x128xf32> to vector<16x128xf32>
    %181 = arith.mulf %179, %180 : vector<16x128xf32>
    %182 = arith.addf %176, %181 : vector<16x128xf32>
    %c160_84 = arith.constant 160 : index
    %c0_85 = arith.constant 0 : index
    %183 = vector.load %arg2[%c160_84, %c0_85] : memref<344x1xf32, #tpu.memory_space<vmem>>, vector<16x1xf32>
    %c7_86 = arith.constant 7 : index
    %c0_87 = arith.constant 0 : index
    %184 = vector.load %arg4[%c7_86, %c0_87] : memref<16x128xf32, #tpu.memory_space<vmem>>, vector<1x128xf32>
    %185 = vector.broadcast %183 : vector<16x1xf32> to vector<16x128xf32>
    %186 = vector.broadcast %184 : vector<1x128xf32> to vector<16x128xf32>
    %187 = arith.mulf %185, %186 : vector<16x128xf32>
    %188 = arith.addf %182, %187 : vector<16x128xf32>
    %c176_88 = arith.constant 176 : index
    %c0_89 = arith.constant 0 : index
    %189 = vector.load %arg2[%c176_88, %c0_89] : memref<344x1xf32, #tpu.memory_space<vmem>>, vector<16x1xf32>
    %c8_90 = arith.constant 8 : index
    %c0_91 = arith.constant 0 : index
    %190 = vector.load %arg4[%c8_90, %c0_91] : memref<16x128xf32, #tpu.memory_space<vmem>>, vector<1x128xf32>
    %191 = vector.broadcast %189 : vector<16x1xf32> to vector<16x128xf32>
    %192 = vector.broadcast %190 : vector<1x128xf32> to vector<16x128xf32>
    %193 = arith.mulf %191, %192 : vector<16x128xf32>
    %194 = arith.addf %188, %193 : vector<16x128xf32>
    %c192_92 = arith.constant 192 : index
    %c0_93 = arith.constant 0 : index
    %195 = vector.load %arg2[%c192_92, %c0_93] : memref<344x1xf32, #tpu.memory_space<vmem>>, vector<16x1xf32>
    %c9_94 = arith.constant 9 : index
    %c0_95 = arith.constant 0 : index
    %196 = vector.load %arg4[%c9_94, %c0_95] : memref<16x128xf32, #tpu.memory_space<vmem>>, vector<1x128xf32>
    %197 = vector.broadcast %195 : vector<16x1xf32> to vector<16x128xf32>
    %198 = vector.broadcast %196 : vector<1x128xf32> to vector<16x128xf32>
    %199 = arith.mulf %197, %198 : vector<16x128xf32>
    %200 = arith.addf %194, %199 : vector<16x128xf32>
    %c208_96 = arith.constant 208 : index
    %c0_97 = arith.constant 0 : index
    %201 = vector.load %arg2[%c208_96, %c0_97] : memref<344x1xf32, #tpu.memory_space<vmem>>, vector<16x1xf32>
    %c10_98 = arith.constant 10 : index
    %c0_99 = arith.constant 0 : index
    %202 = vector.load %arg4[%c10_98, %c0_99] : memref<16x128xf32, #tpu.memory_space<vmem>>, vector<1x128xf32>
    %203 = vector.broadcast %201 : vector<16x1xf32> to vector<16x128xf32>
    %204 = vector.broadcast %202 : vector<1x128xf32> to vector<16x128xf32>
    %205 = arith.mulf %203, %204 : vector<16x128xf32>
    %206 = arith.addf %200, %205 : vector<16x128xf32>
    %c224_100 = arith.constant 224 : index
    %c0_101 = arith.constant 0 : index
    %207 = vector.load %arg2[%c224_100, %c0_101] : memref<344x1xf32, #tpu.memory_space<vmem>>, vector<16x1xf32>
    %c11_102 = arith.constant 11 : index
    %c0_103 = arith.constant 0 : index
    %208 = vector.load %arg4[%c11_102, %c0_103] : memref<16x128xf32, #tpu.memory_space<vmem>>, vector<1x128xf32>
    %209 = vector.broadcast %207 : vector<16x1xf32> to vector<16x128xf32>
    %210 = vector.broadcast %208 : vector<1x128xf32> to vector<16x128xf32>
    %211 = arith.mulf %209, %210 : vector<16x128xf32>
    %212 = arith.addf %206, %211 : vector<16x128xf32>
    %c240_104 = arith.constant 240 : index
    %c0_105 = arith.constant 0 : index
    %213 = vector.load %arg2[%c240_104, %c0_105] : memref<344x1xf32, #tpu.memory_space<vmem>>, vector<16x1xf32>
    %c12_106 = arith.constant 12 : index
    %c0_107 = arith.constant 0 : index
    %214 = vector.load %arg4[%c12_106, %c0_107] : memref<16x128xf32, #tpu.memory_space<vmem>>, vector<1x128xf32>
    %215 = vector.broadcast %213 : vector<16x1xf32> to vector<16x128xf32>
    %216 = vector.broadcast %214 : vector<1x128xf32> to vector<16x128xf32>
    %217 = arith.mulf %215, %216 : vector<16x128xf32>
    %218 = arith.addf %212, %217 : vector<16x128xf32>
    %c256_108 = arith.constant 256 : index
    %c0_109 = arith.constant 0 : index
    %219 = vector.load %arg2[%c256_108, %c0_109] : memref<344x1xf32, #tpu.memory_space<vmem>>, vector<16x1xf32>
    %c13_110 = arith.constant 13 : index
    %c0_111 = arith.constant 0 : index
    %220 = vector.load %arg4[%c13_110, %c0_111] : memref<16x128xf32, #tpu.memory_space<vmem>>, vector<1x128xf32>
    %221 = vector.broadcast %219 : vector<16x1xf32> to vector<16x128xf32>
    %222 = vector.broadcast %220 : vector<1x128xf32> to vector<16x128xf32>
    %223 = arith.mulf %221, %222 : vector<16x128xf32>
    %224 = arith.addf %218, %223 : vector<16x128xf32>
    %c272_112 = arith.constant 272 : index
    %c0_113 = arith.constant 0 : index
    %225 = vector.load %arg2[%c272_112, %c0_113] : memref<344x1xf32, #tpu.memory_space<vmem>>, vector<16x1xf32>
    %c14_114 = arith.constant 14 : index
    %c0_115 = arith.constant 0 : index
    %226 = vector.load %arg4[%c14_114, %c0_115] : memref<16x128xf32, #tpu.memory_space<vmem>>, vector<1x128xf32>
    %227 = vector.broadcast %225 : vector<16x1xf32> to vector<16x128xf32>
    %228 = vector.broadcast %226 : vector<1x128xf32> to vector<16x128xf32>
    %229 = arith.mulf %227, %228 : vector<16x128xf32>
    %230 = arith.addf %224, %229 : vector<16x128xf32>
    %c288_116 = arith.constant 288 : index
    %c0_117 = arith.constant 0 : index
    %231 = vector.load %arg2[%c288_116, %c0_117] : memref<344x1xf32, #tpu.memory_space<vmem>>, vector<16x1xf32>
    %c15_118 = arith.constant 15 : index
    %c0_119 = arith.constant 0 : index
    %232 = vector.load %arg4[%c15_118, %c0_119] : memref<16x128xf32, #tpu.memory_space<vmem>>, vector<1x128xf32>
    %233 = vector.broadcast %231 : vector<16x1xf32> to vector<16x128xf32>
    %234 = vector.broadcast %232 : vector<1x128xf32> to vector<16x128xf32>
    %235 = arith.mulf %233, %234 : vector<16x128xf32>
    %236 = arith.addf %230, %235 : vector<16x128xf32>
    %cst_120 = arith.constant 0.000000e+00 : f32
    %237 = vector.broadcast %cst_120 : f32 to vector<16x128xf32>
    %238 = arith.maximumf %236, %237 : vector<16x128xf32>
    %239 = vector.broadcast %4 : vector<16x1xf32> to vector<16x128xf32>
    %240 = arith.mulf %239, %238 : vector<16x128xf32>
    %cst_121 = arith.constant dense<0.000000e+00> : vector<128xf32>
    %241 = vector.multi_reduction <add>, %240, %cst_121 [0] : vector<16x128xf32> to vector<128xf32>
    %242 = vector.shape_cast %241 : vector<128xf32> to vector<1x128xf32>
    %243 = vector.broadcast %5 : vector<1x1xf32> to vector<1x128xf32>
    %244 = arith.addf %242, %243 : vector<1x128xf32>
    %c1_122 = arith.constant 1 : index
    %c0_123 = arith.constant 0 : index
    %245 = vector.load %arg3[%c1_122, %c0_123] : memref<3x128xf32, #tpu.memory_space<vmem>>, vector<1x128xf32>
    tpu.vector_store %arg3[%c1_122, %c0_123], %244 {strides = array<i32>} : memref<3x128xf32, #tpu.memory_space<vmem>>, vector<1x128xf32>,
    %c2_124 = arith.constant 2 : index
    %c0_125 = arith.constant 0 : index
    %246 = vector.load %arg1[%c2_124, %c0_125] : memref<6x128xf32, #tpu.memory_space<vmem>>, vector<1x128xf32>
    %c5_126 = arith.constant 5 : index
    %c0_127 = arith.constant 0 : index
    %247 = vector.load %arg1[%c5_126, %c0_127] : memref<6x128xf32, #tpu.memory_space<vmem>>, vector<1x128xf32>
    %248 = vector.broadcast %0 : vector<16x1xf32> to vector<16x128xf32>
    %249 = vector.broadcast %246 : vector<1x128xf32> to vector<16x128xf32>
    %250 = arith.mulf %248, %249 : vector<16x128xf32>
    %251 = vector.broadcast %1 : vector<16x1xf32> to vector<16x128xf32>
    %252 = vector.broadcast %247 : vector<1x128xf32> to vector<16x128xf32>
    %253 = arith.mulf %251, %252 : vector<16x128xf32>
    %254 = arith.addf %250, %253 : vector<16x128xf32>
    %255 = vector.broadcast %2 : vector<16x1xf32> to vector<16x128xf32>
    %256 = arith.addf %254, %255 : vector<16x128xf32>
    %cst_128 = arith.constant 0.000000e+00 : f32
    %257 = vector.broadcast %cst_128 : f32 to vector<16x128xf32>
    %258 = arith.maximumf %256, %257 : vector<16x128xf32>
    %c0_129 = arith.constant 0 : index
    %c0_130 = arith.constant 0 : index
    %259 = vector.load %arg4[%c0_129, %c0_130] : memref<16x128xf32, #tpu.memory_space<vmem>>, vector<16x128xf32>
    tpu.vector_store %arg4[%c0_129, %c0_130], %258 {strides = array<i32>} : memref<16x128xf32, #tpu.memory_space<vmem>>, vector<16x128xf32>,
    %c48_131 = arith.constant 48 : index
    %c0_132 = arith.constant 0 : index
    %260 = vector.load %arg2[%c48_131, %c0_132] : memref<344x1xf32, #tpu.memory_space<vmem>>, vector<16x1xf32>
    %c0_133 = arith.constant 0 : index
    %c0_134 = arith.constant 0 : index
    %261 = vector.load %arg4[%c0_133, %c0_134] : memref<16x128xf32, #tpu.memory_space<vmem>>, vector<1x128xf32>
    %262 = vector.broadcast %260 : vector<16x1xf32> to vector<16x128xf32>
    %263 = vector.broadcast %261 : vector<1x128xf32> to vector<16x128xf32>
    %264 = arith.mulf %262, %263 : vector<16x128xf32>
    %265 = arith.addf %7, %264 : vector<16x128xf32>
    %c64_135 = arith.constant 64 : index
    %c0_136 = arith.constant 0 : index
    %266 = vector.load %arg2[%c64_135, %c0_136] : memref<344x1xf32, #tpu.memory_space<vmem>>, vector<16x1xf32>
    %c1_137 = arith.constant 1 : index
    %c0_138 = arith.constant 0 : index
    %267 = vector.load %arg4[%c1_137, %c0_138] : memref<16x128xf32, #tpu.memory_space<vmem>>, vector<1x128xf32>
    %268 = vector.broadcast %266 : vector<16x1xf32> to vector<16x128xf32>
    %269 = vector.broadcast %267 : vector<1x128xf32> to vector<16x128xf32>
    %270 = arith.mulf %268, %269 : vector<16x128xf32>
    %271 = arith.addf %265, %270 : vector<16x128xf32>
    %c80_139 = arith.constant 80 : index
    %c0_140 = arith.constant 0 : index
    %272 = vector.load %arg2[%c80_139, %c0_140] : memref<344x1xf32, #tpu.memory_space<vmem>>, vector<16x1xf32>
    %c2_141 = arith.constant 2 : index
    %c0_142 = arith.constant 0 : index
    %273 = vector.load %arg4[%c2_141, %c0_142] : memref<16x128xf32, #tpu.memory_space<vmem>>, vector<1x128xf32>
    %274 = vector.broadcast %272 : vector<16x1xf32> to vector<16x128xf32>
    %275 = vector.broadcast %273 : vector<1x128xf32> to vector<16x128xf32>
    %276 = arith.mulf %274, %275 : vector<16x128xf32>
    %277 = arith.addf %271, %276 : vector<16x128xf32>
    %c96_143 = arith.constant 96 : index
    %c0_144 = arith.constant 0 : index
    %278 = vector.load %arg2[%c96_143, %c0_144] : memref<344x1xf32, #tpu.memory_space<vmem>>, vector<16x1xf32>
    %c3_145 = arith.constant 3 : index
    %c0_146 = arith.constant 0 : index
    %279 = vector.load %arg4[%c3_145, %c0_146] : memref<16x128xf32, #tpu.memory_space<vmem>>, vector<1x128xf32>
    %280 = vector.broadcast %278 : vector<16x1xf32> to vector<16x128xf32>
    %281 = vector.broadcast %279 : vector<1x128xf32> to vector<16x128xf32>
    %282 = arith.mulf %280, %281 : vector<16x128xf32>
    %283 = arith.addf %277, %282 : vector<16x128xf32>
    %c112_147 = arith.constant 112 : index
    %c0_148 = arith.constant 0 : index
    %284 = vector.load %arg2[%c112_147, %c0_148] : memref<344x1xf32, #tpu.memory_space<vmem>>, vector<16x1xf32>
    %c4_149 = arith.constant 4 : index
    %c0_150 = arith.constant 0 : index
    %285 = vector.load %arg4[%c4_149, %c0_150] : memref<16x128xf32, #tpu.memory_space<vmem>>, vector<1x128xf32>
    %286 = vector.broadcast %284 : vector<16x1xf32> to vector<16x128xf32>
    %287 = vector.broadcast %285 : vector<1x128xf32> to vector<16x128xf32>
    %288 = arith.mulf %286, %287 : vector<16x128xf32>
    %289 = arith.addf %283, %288 : vector<16x128xf32>
    %c128_151 = arith.constant 128 : index
    %c0_152 = arith.constant 0 : index
    %290 = vector.load %arg2[%c128_151, %c0_152] : memref<344x1xf32, #tpu.memory_space<vmem>>, vector<16x1xf32>
    %c5_153 = arith.constant 5 : index
    %c0_154 = arith.constant 0 : index
    %291 = vector.load %arg4[%c5_153, %c0_154] : memref<16x128xf32, #tpu.memory_space<vmem>>, vector<1x128xf32>
    %292 = vector.broadcast %290 : vector<16x1xf32> to vector<16x128xf32>
    %293 = vector.broadcast %291 : vector<1x128xf32> to vector<16x128xf32>
    %294 = arith.mulf %292, %293 : vector<16x128xf32>
    %295 = arith.addf %289, %294 : vector<16x128xf32>
    %c144_155 = arith.constant 144 : index
    %c0_156 = arith.constant 0 : index
    %296 = vector.load %arg2[%c144_155, %c0_156] : memref<344x1xf32, #tpu.memory_space<vmem>>, vector<16x1xf32>
    %c6_157 = arith.constant 6 : index
    %c0_158 = arith.constant 0 : index
    %297 = vector.load %arg4[%c6_157, %c0_158] : memref<16x128xf32, #tpu.memory_space<vmem>>, vector<1x128xf32>
    %298 = vector.broadcast %296 : vector<16x1xf32> to vector<16x128xf32>
    %299 = vector.broadcast %297 : vector<1x128xf32> to vector<16x128xf32>
    %300 = arith.mulf %298, %299 : vector<16x128xf32>
    %301 = arith.addf %295, %300 : vector<16x128xf32>
    %c160_159 = arith.constant 160 : index
    %c0_160 = arith.constant 0 : index
    %302 = vector.load %arg2[%c160_159, %c0_160] : memref<344x1xf32, #tpu.memory_space<vmem>>, vector<16x1xf32>
    %c7_161 = arith.constant 7 : index
    %c0_162 = arith.constant 0 : index
    %303 = vector.load %arg4[%c7_161, %c0_162] : memref<16x128xf32, #tpu.memory_space<vmem>>, vector<1x128xf32>
    %304 = vector.broadcast %302 : vector<16x1xf32> to vector<16x128xf32>
    %305 = vector.broadcast %303 : vector<1x128xf32> to vector<16x128xf32>
    %306 = arith.mulf %304, %305 : vector<16x128xf32>
    %307 = arith.addf %301, %306 : vector<16x128xf32>
    %c176_163 = arith.constant 176 : index
    %c0_164 = arith.constant 0 : index
    %308 = vector.load %arg2[%c176_163, %c0_164] : memref<344x1xf32, #tpu.memory_space<vmem>>, vector<16x1xf32>
    %c8_165 = arith.constant 8 : index
    %c0_166 = arith.constant 0 : index
    %309 = vector.load %arg4[%c8_165, %c0_166] : memref<16x128xf32, #tpu.memory_space<vmem>>, vector<1x128xf32>
    %310 = vector.broadcast %308 : vector<16x1xf32> to vector<16x128xf32>
    %311 = vector.broadcast %309 : vector<1x128xf32> to vector<16x128xf32>
    %312 = arith.mulf %310, %311 : vector<16x128xf32>
    %313 = arith.addf %307, %312 : vector<16x128xf32>
    %c192_167 = arith.constant 192 : index
    %c0_168 = arith.constant 0 : index
    %314 = vector.load %arg2[%c192_167, %c0_168] : memref<344x1xf32, #tpu.memory_space<vmem>>, vector<16x1xf32>
    %c9_169 = arith.constant 9 : index
    %c0_170 = arith.constant 0 : index
    %315 = vector.load %arg4[%c9_169, %c0_170] : memref<16x128xf32, #tpu.memory_space<vmem>>, vector<1x128xf32>
    %316 = vector.broadcast %314 : vector<16x1xf32> to vector<16x128xf32>
    %317 = vector.broadcast %315 : vector<1x128xf32> to vector<16x128xf32>
    %318 = arith.mulf %316, %317 : vector<16x128xf32>
    %319 = arith.addf %313, %318 : vector<16x128xf32>
    %c208_171 = arith.constant 208 : index
    %c0_172 = arith.constant 0 : index
    %320 = vector.load %arg2[%c208_171, %c0_172] : memref<344x1xf32, #tpu.memory_space<vmem>>, vector<16x1xf32>
    %c10_173 = arith.constant 10 : index
    %c0_174 = arith.constant 0 : index
    %321 = vector.load %arg4[%c10_173, %c0_174] : memref<16x128xf32, #tpu.memory_space<vmem>>, vector<1x128xf32>
    %322 = vector.broadcast %320 : vector<16x1xf32> to vector<16x128xf32>
    %323 = vector.broadcast %321 : vector<1x128xf32> to vector<16x128xf32>
    %324 = arith.mulf %322, %323 : vector<16x128xf32>
    %325 = arith.addf %319, %324 : vector<16x128xf32>
    %c224_175 = arith.constant 224 : index
    %c0_176 = arith.constant 0 : index
    %326 = vector.load %arg2[%c224_175, %c0_176] : memref<344x1xf32, #tpu.memory_space<vmem>>, vector<16x1xf32>
    %c11_177 = arith.constant 11 : index
    %c0_178 = arith.constant 0 : index
    %327 = vector.load %arg4[%c11_177, %c0_178] : memref<16x128xf32, #tpu.memory_space<vmem>>, vector<1x128xf32>
    %328 = vector.broadcast %326 : vector<16x1xf32> to vector<16x128xf32>
    %329 = vector.broadcast %327 : vector<1x128xf32> to vector<16x128xf32>
    %330 = arith.mulf %328, %329 : vector<16x128xf32>
    %331 = arith.addf %325, %330 : vector<16x128xf32>
    %c240_179 = arith.constant 240 : index
    %c0_180 = arith.constant 0 : index
    %332 = vector.load %arg2[%c240_179, %c0_180] : memref<344x1xf32, #tpu.memory_space<vmem>>, vector<16x1xf32>
    %c12_181 = arith.constant 12 : index
    %c0_182 = arith.constant 0 : index
    %333 = vector.load %arg4[%c12_181, %c0_182] : memref<16x128xf32, #tpu.memory_space<vmem>>, vector<1x128xf32>
    %334 = vector.broadcast %332 : vector<16x1xf32> to vector<16x128xf32>
    %335 = vector.broadcast %333 : vector<1x128xf32> to vector<16x128xf32>
    %336 = arith.mulf %334, %335 : vector<16x128xf32>
    %337 = arith.addf %331, %336 : vector<16x128xf32>
    %c256_183 = arith.constant 256 : index
    %c0_184 = arith.constant 0 : index
    %338 = vector.load %arg2[%c256_183, %c0_184] : memref<344x1xf32, #tpu.memory_space<vmem>>, vector<16x1xf32>
    %c13_185 = arith.constant 13 : index
    %c0_186 = arith.constant 0 : index
    %339 = vector.load %arg4[%c13_185, %c0_186] : memref<16x128xf32, #tpu.memory_space<vmem>>, vector<1x128xf32>
    %340 = vector.broadcast %338 : vector<16x1xf32> to vector<16x128xf32>
    %341 = vector.broadcast %339 : vector<1x128xf32> to vector<16x128xf32>
    %342 = arith.mulf %340, %341 : vector<16x128xf32>
    %343 = arith.addf %337, %342 : vector<16x128xf32>
    %c272_187 = arith.constant 272 : index
    %c0_188 = arith.constant 0 : index
    %344 = vector.load %arg2[%c272_187, %c0_188] : memref<344x1xf32, #tpu.memory_space<vmem>>, vector<16x1xf32>
    %c14_189 = arith.constant 14 : index
    %c0_190 = arith.constant 0 : index
    %345 = vector.load %arg4[%c14_189, %c0_190] : memref<16x128xf32, #tpu.memory_space<vmem>>, vector<1x128xf32>
    %346 = vector.broadcast %344 : vector<16x1xf32> to vector<16x128xf32>
    %347 = vector.broadcast %345 : vector<1x128xf32> to vector<16x128xf32>
    %348 = arith.mulf %346, %347 : vector<16x128xf32>
    %349 = arith.addf %343, %348 : vector<16x128xf32>
    %c288_191 = arith.constant 288 : index
    %c0_192 = arith.constant 0 : index
    %350 = vector.load %arg2[%c288_191, %c0_192] : memref<344x1xf32, #tpu.memory_space<vmem>>, vector<16x1xf32>
    %c15_193 = arith.constant 15 : index
    %c0_194 = arith.constant 0 : index
    %351 = vector.load %arg4[%c15_193, %c0_194] : memref<16x128xf32, #tpu.memory_space<vmem>>, vector<1x128xf32>
    %352 = vector.broadcast %350 : vector<16x1xf32> to vector<16x128xf32>
    %353 = vector.broadcast %351 : vector<1x128xf32> to vector<16x128xf32>
    %354 = arith.mulf %352, %353 : vector<16x128xf32>
    %355 = arith.addf %349, %354 : vector<16x128xf32>
    %cst_195 = arith.constant 0.000000e+00 : f32
    %356 = vector.broadcast %cst_195 : f32 to vector<16x128xf32>
    %357 = arith.maximumf %355, %356 : vector<16x128xf32>
    %358 = vector.broadcast %4 : vector<16x1xf32> to vector<16x128xf32>
    %359 = arith.mulf %358, %357 : vector<16x128xf32>
    %cst_196 = arith.constant dense<0.000000e+00> : vector<128xf32>
    %360 = vector.multi_reduction <add>, %359, %cst_196 [0] : vector<16x128xf32> to vector<128xf32>
    %361 = vector.shape_cast %360 : vector<128xf32> to vector<1x128xf32>
    %362 = vector.broadcast %5 : vector<1x1xf32> to vector<1x128xf32>
    %363 = arith.addf %361, %362 : vector<1x128xf32>
    %c2_197 = arith.constant 2 : index
    %c0_198 = arith.constant 0 : index
    %364 = vector.load %arg3[%c2_197, %c0_198] : memref<3x128xf32, #tpu.memory_space<vmem>>, vector<1x128xf32>
    tpu.vector_store %arg3[%c2_197, %c0_198], %363 {strides = array<i32>} : memref<3x128xf32, #tpu.memory_space<vmem>>, vector<1x128xf32>,
    return
  }
  func.func @transform_0(%arg0: i32) -> (i32, i32) {
    %c0_i32 = arith.constant 0 : i32
    %c0_i32_0 = arith.constant 0 : i32
    return %c0_i32, %arg0 : i32, i32
  }
  func.func @transform_1(%arg0: i32) -> (i32, i32) {
    %c0_i32 = arith.constant 0 : i32
    %c0_i32_0 = arith.constant 0 : i32
    %c0_i32_1 = arith.constant 0 : i32
    return %c0_i32, %c0_i32_0 : i32, i32
  }
  func.func @transform_2(%arg0: i32) -> (i32, i32) {
    %c0_i32 = arith.constant 0 : i32
    %c0_i32_0 = arith.constant 0 : i32
    return %c0_i32, %arg0 : i32, i32
  }
}

</mosaic_0001>

<llo_original>
// kernel: splitted_model2_forward.1
$region0: #{splitted_model2_forward.1}
  #allocation0 [shape = 'u32[]', space=smem, size = 0x4, offset = 0x4, fixed_abs, tag = 'smem constant byte address 0x4 - core index']
  #allocation1 [shape = 'u32[144,128]{1,0:T(1,128)}', space=vmem, size = 0x12000, scoped, tag = 'internal scratch']
  #allocation2 [shape = 'f32[16,128]{1,0:T(8,128)}', space=vmem, size = 0x2000, scoped, tag = 'scratch operand']
  %s0 = inlined_call_operand.vmem [shape: f32[6,128], index: 0, kind: input, shape index: {}]
  %s1 = inlined_call_operand.vmem [shape: f32[344,1], index: 1, kind: input, shape index: {}]
  %s2 = inlined_call_operand.vmem [shape: f32[3,128], index: 2, kind: output, shape index: {}]
  %s3 = sld [smem:[#allocation0]]
  $region18: #{splitted_model2_forward.1} parent=0
    _
  %s5 = ssub.s32 1, %s3
  %s6 = scalar_select 0, %s5, %s3
  // Predicated region
  $region2: #{splitted_model2_forward.1} parent=0 // pred_check
    _
  $region3: #{splitted_model2_forward.1} parent=0 // pred_check_branch
    %8 = sbr.rel (0) target = $region5
  $region4: #{splitted_model2_forward.1} parent=0 // pred_region
    _
  $region5: #{splitted_model2_forward.1} parent=0 // pred_fallthru
    _
  // Predicated region
  $region6: #{splitted_model2_forward.1} parent=0 // pred_check
    _
  $region7: #{splitted_model2_forward.1} parent=0 // pred_check_branch
    %10 = sbr.rel (0) target = $region9
  $region8: #{splitted_model2_forward.1} parent=0 // pred_region
    _
  $region9: #{splitted_model2_forward.1} parent=0 // pred_fallthru
    _
  %v11 = vld [vmem:[%s1] sm:$0xff]
  %v12 = vld [vmem:[%s1 + $0x8] sm:$0xff]
  %v13 = vld [vmem:[%s1 + $0x10] sm:$0xff]
  %v14 = vld [vmem:[%s1 + $0x18] sm:$0xff]
  %v15 = vld [vmem:[%s1 + $0x20] sm:$0xff]
  %v16 = vld [vmem:[%s1 + $0x28] sm:$0xff]
  %v17 = vld [vmem:[%s1 + $0x130] sm:$0xff]
  %v18 = vld [vmem:[%s1 + $0x138] sm:$0xff]
  %v19 = vld [vmem:[%s1 + $0x140] sm:$0xff]
  %v20 = vld [vmem:[%s1 + $0x148] sm:$0xff]
  %v21 = vld [vmem:[%s1 + $0x150] sm:$0x1]
  %23 = vset.pattern.permute.xlu0 0
  %24 = vperm.xlu0 %23, %v17
  %v25 = vpop.permute.xlu0 %24
  %28 = vset.pattern.permute.xlu0 0
  %29 = vperm.xlu0 %28, %v18
  %v30 = vpop.permute.xlu0 %29
  %v32 = vld [vmem:[%s0] sm:$0x1]
  %v33 = vld [vmem:[%s0 + $0x3] sm:$0x1]
  %35 = vset.pattern.permute.xlu0 0
  %36 = vperm.xlu0 %35, %v11
  %v37 = vpop.permute.xlu0 %36
  %40 = vset.pattern.permute.xlu0 0
  %41 = vperm.xlu0 %40, %v12
  %v42 = vpop.permute.xlu0 %41
  %v44 = vlaneseq
  %v45 = vshrl.u32 %v44, 7
  %v46 = vsub.s32 0, %v45
  %v47 = vrot.slane %v32, %v46
  %v48 = vmul.f32 %v37, %v47
  %v49 = vmul.f32 %v42, %v47
  %51 = vset.pattern.permute.xlu0 0
  %52 = vperm.xlu0 %51, %v13
  %v53 = vpop.permute.xlu0 %52
  %56 = vset.pattern.permute.xlu0 0
  %57 = vperm.xlu0 %56, %v14
  %v58 = vpop.permute.xlu0 %57
  %v60 = vlaneseq
  %v61 = vshrl.u32 %v60, 7
  %v62 = vsub.s32 0, %v61
  %v63 = vrot.slane %v33, %v62
  %v64 = vmul.f32 %v53, %v63
  %v65 = vmul.f32 %v58, %v63
  %v66 = vadd.f32 %v48, %v64
  %v67 = vadd.f32 %v49, %v65
  %69 = vset.pattern.permute.xlu0 0
  %70 = vperm.xlu0 %69, %v15
  %v71 = vpop.permute.xlu0 %70
  %74 = vset.pattern.permute.xlu0 0
  %75 = vperm.xlu0 %74, %v16
  %v76 = vpop.permute.xlu0 %75
  %v78 = vadd.f32 %v66, %v71
  %v79 = vadd.f32 %v67, %v76
  %v80 = vmax.f32 %v78, 0.0
  %v81 = vmax.f32 %v79, 0.0
  %82 = vst [vmem:[#allocation2] sm:$0xff] %v80
  %83 = vst [vmem:[#allocation2 + $0x8] sm:$0xff] %v81
  %v84 = vld [vmem:[%s1 + $0x30] sm:$0xff]
  %v85 = vld [vmem:[%s1 + $0x38] sm:$0xff]
  %v86 = vld [vmem:[#allocation2] sm:$0x1]
  %88 = vset.pattern.permute.xlu0 0
  %89 = vperm.xlu0 %88, %v84
  %v90 = vpop.permute.xlu0 %89
  %93 = vset.pattern.permute.xlu0 0
  %94 = vperm.xlu0 %93, %v85
  %v95 = vpop.permute.xlu0 %94
  %v97 = vlaneseq
  %v98 = vshrl.u32 %v97, 7
  %v99 = vsub.s32 0, %v98
  %v100 = vrot.slane %v86, %v99
  %v101 = vmul.f32 %v90, %v100
  %v102 = vmul.f32 %v95, %v100
  %v103 = vadd.f32 %v25, %v101
  %v104 = vadd.f32 %v30, %v102
  %v105 = vld [vmem:[%s1 + $0x40] sm:$0xff]
  %v106 = vld [vmem:[%s1 + $0x48] sm:$0xff]
  %v107 = vld [vmem:[#allocation2 + $0x1] sm:$0x1]
  %109 = vset.pattern.permute.xlu0 0
  %110 = vperm.xlu0 %109, %v105
  %v111 = vpop.permute.xlu0 %110
  %114 = vset.pattern.permute.xlu0 0
  %115 = vperm.xlu0 %114, %v106
  %v116 = vpop.permute.xlu0 %115
  %v118 = vlaneseq
  %v119 = vshrl.u32 %v118, 7
  %v120 = vsub.s32 0, %v119
  %v121 = vrot.slane %v107, %v120
  %v122 = vmul.f32 %v111, %v121
  %v123 = vmul.f32 %v116, %v121
  %v124 = vadd.f32 %v103, %v122
  %v125 = vadd.f32 %v104, %v123
  %v126 = vld [vmem:[%s1 + $0x50] sm:$0xff]
  %v127 = vld [vmem:[%s1 + $0x58] sm:$0xff]
  %v128 = vld [vmem:[#allocation2 + $0x2] sm:$0x1]
  %130 = vset.pattern.permute.xlu0 0
  %131 = vperm.xlu0 %130, %v126
  %v132 = vpop.permute.xlu0 %131
  %135 = vset.pattern.permute.xlu0 0
  %136 = vperm.xlu0 %135, %v127
  %v137 = vpop.permute.xlu0 %136
  %v139 = vlaneseq
  %v140 = vshrl.u32 %v139, 7
  %v141 = vsub.s32 0, %v140
  %v142 = vrot.slane %v128, %v141
  %v143 = vmul.f32 %v132, %v142
  %v144 = vmul.f32 %v137, %v142
  %v145 = vadd.f32 %v124, %v143
  %v146 = vadd.f32 %v125, %v144
  %v147 = vld [vmem:[%s1 + $0x60] sm:$0xff]
  %v148 = vld [vmem:[%s1 + $0x68] sm:$0xff]
  %v149 = vld [vmem:[#allocation2 + $0x3] sm:$0x1]
  %151 = vset.pattern.permute.xlu0 0
  %152 = vperm.xlu0 %151, %v147
  %v153 = vpop.permute.xlu0 %152
  %156 = vset.pattern.permute.xlu0 0
  %157 = vperm.xlu0 %156, %v148
  %v158 = vpop.permute.xlu0 %157
  %v160 = vlaneseq
  %v161 = vshrl.u32 %v160, 7
  %v162 = vsub.s32 0, %v161
  %v163 = vrot.slane %v149, %v162
  %v164 = vmul.f32 %v153, %v163
  %v165 = vmul.f32 %v158, %v163
  %v166 = vadd.f32 %v145, %v164
  %v167 = vadd.f32 %v146, %v165
  %v168 = vld [vmem:[%s1 + $0x70] sm:$0xff]
  %v169 = vld [vmem:[%s1 + $0x78] sm:$0xff]
  %v170 = vld [vmem:[#allocation2 + $0x4] sm:$0x1]
  %172 = vset.pattern.permute.xlu0 0
  %173 = vperm.xlu0 %172, %v168
  %v174 = vpop.permute.xlu0 %173
  %177 = vset.pattern.permute.xlu0 0
  %178 = vperm.xlu0 %177, %v169
  %v179 = vpop.permute.xlu0 %178
  %v181 = vlaneseq
  %v182 = vshrl.u32 %v181, 7
  %v183 = vsub.s32 0, %v182
  %v184 = vrot.slane %v170, %v183
  %v185 = vmul.f32 %v174, %v184
  %v186 = vmul.f32 %v179, %v184
  %v187 = vadd.f32 %v166, %v185
  %v188 = vadd.f32 %v167, %v186
  %v189 = vld [vmem:[%s1 + $0x80] sm:$0xff]
  %v190 = vld [vmem:[%s1 + $0x88] sm:$0xff]
  %v191 = vld [vmem:[#allocation2 + $0x5] sm:$0x1]
  %193 = vset.pattern.permute.xlu0 0
  %194 = vperm.xlu0 %193, %v189
  %v195 = vpop.permute.xlu0 %194
  %198 = vset.pattern.permute.xlu0 0
  %199 = vperm.xlu0 %198, %v190
  %v200 = vpop.permute.xlu0 %199
  %v202 = vlaneseq
  %v203 = vshrl.u32 %v202, 7
  %v204 = vsub.s32 0, %v203
  %v205 = vrot.slane %v191, %v204
  %v206 = vmul.f32 %v195, %v205
  %v207 = vmul.f32 %v200, %v205
  %v208 = vadd.f32 %v187, %v206
  %v209 = vadd.f32 %v188, %v207
  %v210 = vld [vmem:[%s1 + $0x90] sm:$0xff]
  %v211 = vld [vmem:[%s1 + $0x98] sm:$0xff]
  %v212 = vld [vmem:[#allocation2 + $0x6] sm:$0x1]
  %214 = vset.pattern.permute.xlu0 0
  %215 = vperm.xlu0 %214, %v210
  %v216 = vpop.permute.xlu0 %215
  %219 = vset.pattern.permute.xlu0 0
  %220 = vperm.xlu0 %219, %v211
  %v221 = vpop.permute.xlu0 %220
  %v223 = vlaneseq
  %v224 = vshrl.u32 %v223, 7
  %v225 = vsub.s32 0, %v224
  %v226 = vrot.slane %v212, %v225
  %v227 = vmul.f32 %v216, %v226
  %v228 = vmul.f32 %v221, %v226
  %v229 = vadd.f32 %v208, %v227
  %v230 = vadd.f32 %v209, %v228
  %v231 = vld [vmem:[%s1 + $0xa0] sm:$0xff]
  %v232 = vld [vmem:[%s1 + $0xa8] sm:$0xff]
  %v233 = vld [vmem:[#allocation2 + $0x7] sm:$0x1]
  %235 = vset.pattern.permute.xlu0 0
  %236 = vperm.xlu0 %235, %v231
  %v237 = vpop.permute.xlu0 %236
  %240 = vset.pattern.permute.xlu0 0
  %241 = vperm.xlu0 %240, %v232
  %v242 = vpop.permute.xlu0 %241
  %v244 = vlaneseq
  %v245 = vshrl.u32 %v244, 7
  %v246 = vsub.s32 0, %v245
  %v247 = vrot.slane %v233, %v246
  %v248 = vmul.f32 %v237, %v247
  %v249 = vmul.f32 %v242, %v247
  %v250 = vadd.f32 %v229, %v248
  %v251 = vadd.f32 %v230, %v249
  %v252 = vld [vmem:[%s1 + $0xb0] sm:$0xff]
  %v253 = vld [vmem:[%s1 + $0xb8] sm:$0xff]
  %v254 = vld [vmem:[#allocation2 + $0x8] sm:$0x1]
  %256 = vset.pattern.permute.xlu0 0
  %257 = vperm.xlu0 %256, %v252
  %v258 = vpop.permute.xlu0 %257
  %261 = vset.pattern.permute.xlu0 0
  %262 = vperm.xlu0 %261, %v253
  %v263 = vpop.permute.xlu0 %262
  %v265 = vlaneseq
  %v266 = vshrl.u32 %v265, 7
  %v267 = vsub.s32 0, %v266
  %v268 = vrot.slane %v254, %v267
  %v269 = vmul.f32 %v258, %v268
  %v270 = vmul.f32 %v263, %v268
  %v271 = vadd.f32 %v250, %v269
  %v272 = vadd.f32 %v251, %v270
  %v273 = vld [vmem:[%s1 + $0xc0] sm:$0xff]
  %v274 = vld [vmem:[%s1 + $0xc8] sm:$0xff]
  %v275 = vld [vmem:[#allocation2 + $0x9] sm:$0x1]
  %277 = vset.pattern.permute.xlu0 0
  %278 = vperm.xlu0 %277, %v273
  %v279 = vpop.permute.xlu0 %278
  %282 = vset.pattern.permute.xlu0 0
  %283 = vperm.xlu0 %282, %v274
  %v284 = vpop.permute.xlu0 %283
  %v286 = vlaneseq
  %v287 = vshrl.u32 %v286, 7
  %v288 = vsub.s32 0, %v287
  %v289 = vrot.slane %v275, %v288
  %v290 = vmul.f32 %v279, %v289
  %v291 = vmul.f32 %v284, %v289
  %v292 = vadd.f32 %v271, %v290
  %v293 = vadd.f32 %v272, %v291
  %v294 = vld [vmem:[%s1 + $0xd0] sm:$0xff]
  %v295 = vld [vmem:[%s1 + $0xd8] sm:$0xff]
  %v296 = vld [vmem:[#allocation2 + $0xa] sm:$0x1]
  %298 = vset.pattern.permute.xlu0 0
  %299 = vperm.xlu0 %298, %v294
  %v300 = vpop.permute.xlu0 %299
  %303 = vset.pattern.permute.xlu0 0
  %304 = vperm.xlu0 %303, %v295
  %v305 = vpop.permute.xlu0 %304
  %v307 = vlaneseq
  %v308 = vshrl.u32 %v307, 7
  %v309 = vsub.s32 0, %v308
  %v310 = vrot.slane %v296, %v309
  %v311 = vmul.f32 %v300, %v310
  %v312 = vmul.f32 %v305, %v310
  %v313 = vadd.f32 %v292, %v311
  %v314 = vadd.f32 %v293, %v312
  %v315 = vld [vmem:[%s1 + $0xe0] sm:$0xff]
  %v316 = vld [vmem:[%s1 + $0xe8] sm:$0xff]
  %v317 = vld [vmem:[#allocation2 + $0xb] sm:$0x1]
  %319 = vset.pattern.permute.xlu0 0
  %320 = vperm.xlu0 %319, %v315
  %v321 = vpop.permute.xlu0 %320
  %324 = vset.pattern.permute.xlu0 0
  %325 = vperm.xlu0 %324, %v316
  %v326 = vpop.permute.xlu0 %325
  %v328 = vlaneseq
  %v329 = vshrl.u32 %v328, 7
  %v330 = vsub.s32 0, %v329
  %v331 = vrot.slane %v317, %v330
  %v332 = vmul.f32 %v321, %v331
  %v333 = vmul.f32 %v326, %v331
  %v334 = vadd.f32 %v313, %v332
  %v335 = vadd.f32 %v314, %v333
  %v336 = vld [vmem:[%s1 + $0xf0] sm:$0xff]
  %v337 = vld [vmem:[%s1 + $0xf8] sm:$0xff]
  %v338 = vld [vmem:[#allocation2 + $0xc] sm:$0x1]
  %340 = vset.pattern.permute.xlu0 0
  %341 = vperm.xlu0 %340, %v336
  %v342 = vpop.permute.xlu0 %341
  %345 = vset.pattern.permute.xlu0 0
  %346 = vperm.xlu0 %345, %v337
  %v347 = vpop.permute.xlu0 %346
  %v349 = vlaneseq
  %v350 = vshrl.u32 %v349, 7
  %v351 = vsub.s32 0, %v350
  %v352 = vrot.slane %v338, %v351
  %v353 = vmul.f32 %v342, %v352
  %v354 = vmul.f32 %v347, %v352
  %v355 = vadd.f32 %v334, %v353
  %v356 = vadd.f32 %v335, %v354
  %v357 = vld [vmem:[%s1 + $0x100] sm:$0xff]
  %v358 = vld [vmem:[%s1 + $0x108] sm:$0xff]
  %v359 = vld [vmem:[#allocation2 + $0xd] sm:$0x1]
  %361 = vset.pattern.permute.xlu0 0
  %362 = vperm.xlu0 %361, %v357
  %v363 = vpop.permute.xlu0 %362
  %366 = vset.pattern.permute.xlu0 0
  %367 = vperm.xlu0 %366, %v358
  %v368 = vpop.permute.xlu0 %367
  %v370 = vlaneseq
  %v371 = vshrl.u32 %v370, 7
  %v372 = vsub.s32 0, %v371
  %v373 = vrot.slane %v359, %v372
  %v374 = vmul.f32 %v363, %v373
  %v375 = vmul.f32 %v368, %v373
  %v376 = vadd.f32 %v355, %v374
  %v377 = vadd.f32 %v356, %v375
  %v378 = vld [vmem:[%s1 + $0x110] sm:$0xff]
  %v379 = vld [vmem:[%s1 + $0x118] sm:$0xff]
  %v380 = vld [vmem:[#allocation2 + $0xe] sm:$0x1]
  %382 = vset.pattern.permute.xlu0 0
  %383 = vperm.xlu0 %382, %v378
  %v384 = vpop.permute.xlu0 %383
  %387 = vset.pattern.permute.xlu0 0
  %388 = vperm.xlu0 %387, %v379
  %v389 = vpop.permute.xlu0 %388
  %v391 = vlaneseq
  %v392 = vshrl.u32 %v391, 7
  %v393 = vsub.s32 0, %v392
  %v394 = vrot.slane %v380, %v393
  %v395 = vmul.f32 %v384, %v394
  %v396 = vmul.f32 %v389, %v394
  %v397 = vadd.f32 %v376, %v395
  %v398 = vadd.f32 %v377, %v396
  %v399 = vld [vmem:[%s1 + $0x120] sm:$0xff]
  %v400 = vld [vmem:[%s1 + $0x128] sm:$0xff]
  %v401 = vld [vmem:[#allocation2 + $0xf] sm:$0x1]
  %403 = vset.pattern.permute.xlu0 0
  %404 = vperm.xlu0 %403, %v399
  %v405 = vpop.permute.xlu0 %404
  %408 = vset.pattern.permute.xlu0 0
  %409 = vperm.xlu0 %408, %v400
  %v410 = vpop.permute.xlu0 %409
  %v412 = vlaneseq
  %v413 = vshrl.u32 %v412, 7
  %v414 = vsub.s32 0, %v413
  %v415 = vrot.slane %v401, %v414
  %v416 = vmul.f32 %v405, %v415
  %v417 = vmul.f32 %v410, %v415
  %v418 = vadd.f32 %v397, %v416
  %v419 = vadd.f32 %v398, %v417
  %v420 = vmax.f32 %v418, 0.0
  %v421 = vmax.f32 %v419, 0.0
  %423 = vset.pattern.permute.xlu0 0
  %424 = vperm.xlu0 %423, %v19
  %v425 = vpop.permute.xlu0 %424
  %428 = vset.pattern.permute.xlu0 0
  %429 = vperm.xlu0 %428, %v20
  %v430 = vpop.permute.xlu0 %429
  %v432 = vmul.f32 %v425, %v420
  %v433 = vmul.f32 %v430, %v421
  %v434 = vadd.f32 %v432, %v433
  %v435 = vrot.slane %v434, 4
  %v436 = vadd.f32 %v434, %v435
  %v437 = vrot.slane %v436, 2
  %v438 = vadd.f32 %v436, %v437
  %v439 = vrot.slane %v438, 1
  %v440 = vadd.f32 %v438, %v439
  %442 = vset.pattern.permute.xlu0 0
  %443 = vperm.xlu0 %442, %v21
  %v444 = vpop.permute.xlu0 %443
  %v446 = vadd.f32 %v440, %v444
  %447 = vst [vmem:[%s2] sm:$0x1] %v446
  %v448 = vld [vmem:[%s0 + $0x1] sm:$0x1]
  %v449 = vld [vmem:[%s0 + $0x4] sm:$0x1]
  %v450 = vlaneseq
  %v451 = vshrl.u32 %v450, 7
  %v452 = vsub.s32 0, %v451
  %v453 = vrot.slane %v448, %v452
  %v454 = vmul.f32 %v37, %v453
  %v455 = vmul.f32 %v42, %v453
  %v456 = vlaneseq
  %v457 = vshrl.u32 %v456, 7
  %v458 = vsub.s32 0, %v457
  %v459 = vrot.slane %v449, %v458
  %v460 = vmul.f32 %v53, %v459
  %v461 = vmul.f32 %v58, %v459
  %v462 = vadd.f32 %v454, %v460
  %v463 = vadd.f32 %v455, %v461
  %v464 = vadd.f32 %v462, %v71
  %v465 = vadd.f32 %v463, %v76
  %v466 = vmax.f32 %v464, 0.0
  %v467 = vmax.f32 %v465, 0.0
  %468 = vst [vmem:[#allocation2] sm:$0xff] %v466
  %469 = vst [vmem:[#allocation2 + $0x8] sm:$0xff] %v467
  %v470 = vld [vmem:[%s1 + $0x30] sm:$0xff]
  %v471 = vld [vmem:[%s1 + $0x38] sm:$0xff]
  %v472 = vld [vmem:[#allocation2] sm:$0x1]
  %474 = vset.pattern.permute.xlu0 0
  %475 = vperm.xlu0 %474, %v470
  %v476 = vpop.permute.xlu0 %475
  %479 = vset.pattern.permute.xlu0 0
  %480 = vperm.xlu0 %479, %v471
  %v481 = vpop.permute.xlu0 %480
  %v483 = vlaneseq
  %v484 = vshrl.u32 %v483, 7
  %v485 = vsub.s32 0, %v484
  %v486 = vrot.slane %v472, %v485
  %v487 = vmul.f32 %v476, %v486
  %v488 = vmul.f32 %v481, %v486
  %v489 = vadd.f32 %v25, %v487
  %v490 = vadd.f32 %v30, %v488
  %v491 = vld [vmem:[%s1 + $0x40] sm:$0xff]
  %v492 = vld [vmem:[%s1 + $0x48] sm:$0xff]
  %v493 = vld [vmem:[#allocation2 + $0x1] sm:$0x1]
  %495 = vset.pattern.permute.xlu0 0
  %496 = vperm.xlu0 %495, %v491
  %v497 = vpop.permute.xlu0 %496
  %500 = vset.pattern.permute.xlu0 0
  %501 = vperm.xlu0 %500, %v492
  %v502 = vpop.permute.xlu0 %501
  %v504 = vlaneseq
  %v505 = vshrl.u32 %v504, 7
  %v506 = vsub.s32 0, %v505
  %v507 = vrot.slane %v493, %v506
  %v508 = vmul.f32 %v497, %v507
  %v509 = vmul.f32 %v502, %v507
  %v510 = vadd.f32 %v489, %v508
  %v511 = vadd.f32 %v490, %v509
  %v512 = vld [vmem:[%s1 + $0x50] sm:$0xff]
  %v513 = vld [vmem:[%s1 + $0x58] sm:$0xff]
  %v514 = vld [vmem:[#allocation2 + $0x2] sm:$0x1]
  %516 = vset.pattern.permute.xlu0 0
  %517 = vperm.xlu0 %516, %v512
  %v518 = vpop.permute.xlu0 %517
  %521 = vset.pattern.permute.xlu0 0
  %522 = vperm.xlu0 %521, %v513
  %v523 = vpop.permute.xlu0 %522
  %v525 = vlaneseq
  %v526 = vshrl.u32 %v525, 7
  %v527 = vsub.s32 0, %v526
  %v528 = vrot.slane %v514, %v527
  %v529 = vmul.f32 %v518, %v528
  %v530 = vmul.f32 %v523, %v528
  %v531 = vadd.f32 %v510, %v529
  %v532 = vadd.f32 %v511, %v530
  %v533 = vld [vmem:[%s1 + $0x60] sm:$0xff]
  %v534 = vld [vmem:[%s1 + $0x68] sm:$0xff]
  %v535 = vld [vmem:[#allocation2 + $0x3] sm:$0x1]
  %537 = vset.pattern.permute.xlu0 0
  %538 = vperm.xlu0 %537, %v533
  %v539 = vpop.permute.xlu0 %538
  %542 = vset.pattern.permute.xlu0 0
  %543 = vperm.xlu0 %542, %v534
  %v544 = vpop.permute.xlu0 %543
  %v546 = vlaneseq
  %v547 = vshrl.u32 %v546, 7
  %v548 = vsub.s32 0, %v547
  %v549 = vrot.slane %v535, %v548
  %v550 = vmul.f32 %v539, %v549
  %v551 = vmul.f32 %v544, %v549
  %v552 = vadd.f32 %v531, %v550
  %v553 = vadd.f32 %v532, %v551
  %v554 = vld [vmem:[%s1 + $0x70] sm:$0xff]
  %v555 = vld [vmem:[%s1 + $0x78] sm:$0xff]
  %v556 = vld [vmem:[#allocation2 + $0x4] sm:$0x1]
  %558 = vset.pattern.permute.xlu0 0
  %559 = vperm.xlu0 %558, %v554
  %v560 = vpop.permute.xlu0 %559
  %563 = vset.pattern.permute.xlu0 0
  %564 = vperm.xlu0 %563, %v555
  %v565 = vpop.permute.xlu0 %564
  %v567 = vlaneseq
  %v568 = vshrl.u32 %v567, 7
  %v569 = vsub.s32 0, %v568
  %v570 = vrot.slane %v556, %v569
  %v571 = vmul.f32 %v560, %v570
  %v572 = vmul.f32 %v565, %v570
  %v573 = vadd.f32 %v552, %v571
  %v574 = vadd.f32 %v553, %v572
  %v575 = vld [vmem:[%s1 + $0x80] sm:$0xff]
  %v576 = vld [vmem:[%s1 + $0x88] sm:$0xff]
  %v577 = vld [vmem:[#allocation2 + $0x5] sm:$0x1]
  %579 = vset.pattern.permute.xlu0 0
  %580 = vperm.xlu0 %579, %v575
  %v581 = vpop.permute.xlu0 %580
  %584 = vset.pattern.permute.xlu0 0
  %585 = vperm.xlu0 %584, %v576
  %v586 = vpop.permute.xlu0 %585
  %v588 = vlaneseq
  %v589 = vshrl.u32 %v588, 7
  %v590 = vsub.s32 0, %v589
  %v591 = vrot.slane %v577, %v590
  %v592 = vmul.f32 %v581, %v591
  %v593 = vmul.f32 %v586, %v591
  %v594 = vadd.f32 %v573, %v592
  %v595 = vadd.f32 %v574, %v593
  %v596 = vld [vmem:[%s1 + $0x90] sm:$0xff]
  %v597 = vld [vmem:[%s1 + $0x98] sm:$0xff]
  %v598 = vld [vmem:[#allocation2 + $0x6] sm:$0x1]
  %600 = vset.pattern.permute.xlu0 0
  %601 = vperm.xlu0 %600, %v596
  %v602 = vpop.permute.xlu0 %601
  %605 = vset.pattern.permute.xlu0 0
  %606 = vperm.xlu0 %605, %v597
  %v607 = vpop.permute.xlu0 %606
  %v609 = vlaneseq
  %v610 = vshrl.u32 %v609, 7
  %v611 = vsub.s32 0, %v610
  %v612 = vrot.slane %v598, %v611
  %v613 = vmul.f32 %v602, %v612
  %v614 = vmul.f32 %v607, %v612
  %v615 = vadd.f32 %v594, %v613
  %v616 = vadd.f32 %v595, %v614
  %v617 = vld [vmem:[%s1 + $0xa0] sm:$0xff]
  %v618 = vld [vmem:[%s1 + $0xa8] sm:$0xff]
  %v619 = vld [vmem:[#allocation2 + $0x7] sm:$0x1]
  %621 = vset.pattern.permute.xlu0 0
  %622 = vperm.xlu0 %621, %v617
  %v623 = vpop.permute.xlu0 %622
  %626 = vset.pattern.permute.xlu0 0
  %627 = vperm.xlu0 %626, %v618
  %v628 = vpop.permute.xlu0 %627
  %v630 = vlaneseq
  %v631 = vshrl.u32 %v630, 7
  %v632 = vsub.s32 0, %v631
  %v633 = vrot.slane %v619, %v632
  %v634 = vmul.f32 %v623, %v633
  %v635 = vmul.f32 %v628, %v633
  %v636 = vadd.f32 %v615, %v634
  %v637 = vadd.f32 %v616, %v635
  %v638 = vld [vmem:[%s1 + $0xb0] sm:$0xff]
  %v639 = vld [vmem:[%s1 + $0xb8] sm:$0xff]
  %v640 = vld [vmem:[#allocation2 + $0x8] sm:$0x1]
  %642 = vset.pattern.permute.xlu0 0
  %643 = vperm.xlu0 %642, %v638
  %v644 = vpop.permute.xlu0 %643
  %647 = vset.pattern.permute.xlu0 0
  %648 = vperm.xlu0 %647, %v639
  %v649 = vpop.permute.xlu0 %648
  %v651 = vlaneseq
  %v652 = vshrl.u32 %v651, 7
  %v653 = vsub.s32 0, %v652
  %v654 = vrot.slane %v640, %v653
  %v655 = vmul.f32 %v644, %v654
  %v656 = vmul.f32 %v649, %v654
  %v657 = vadd.f32 %v636, %v655
  %v658 = vadd.f32 %v637, %v656
  %v659 = vld [vmem:[%s1 + $0xc0] sm:$0xff]
  %v660 = vld [vmem:[%s1 + $0xc8] sm:$0xff]
  %v661 = vld [vmem:[#allocation2 + $0x9] sm:$0x1]
  %663 = vset.pattern.permute.xlu0 0
  %664 = vperm.xlu0 %663, %v659
  %v665 = vpop.permute.xlu0 %664
  %668 = vset.pattern.permute.xlu0 0
  %669 = vperm.xlu0 %668, %v660
  %v670 = vpop.permute.xlu0 %669
  %v672 = vlaneseq
  %v673 = vshrl.u32 %v672, 7
  %v674 = vsub.s32 0, %v673
  %v675 = vrot.slane %v661, %v674
  %v676 = vmul.f32 %v665, %v675
  %v677 = vmul.f32 %v670, %v675
  %v678 = vadd.f32 %v657, %v676
  %v679 = vadd.f32 %v658, %v677
  %v680 = vld [vmem:[%s1 + $0xd0] sm:$0xff]
  %v681 = vld [vmem:[%s1 + $0xd8] sm:$0xff]
  %v682 = vld [vmem:[#allocation2 + $0xa] sm:$0x1]
  %684 = vset.pattern.permute.xlu0 0
  %685 = vperm.xlu0 %684, %v680
  %v686 = vpop.permute.xlu0 %685
  %689 = vset.pattern.permute.xlu0 0
  %690 = vperm.xlu0 %689, %v681
  %v691 = vpop.permute.xlu0 %690
  %v693 = vlaneseq
  %v694 = vshrl.u32 %v693, 7
  %v695 = vsub.s32 0, %v694
  %v696 = vrot.slane %v682, %v695
  %v697 = vmul.f32 %v686, %v696
  %v698 = vmul.f32 %v691, %v696
  %v699 = vadd.f32 %v678, %v697
  %v700 = vadd.f32 %v679, %v698
  %v701 = vld [vmem:[%s1 + $0xe0] sm:$0xff]
  %v702 = vld [vmem:[%s1 + $0xe8] sm:$0xff]
  %v703 = vld [vmem:[#allocation2 + $0xb] sm:$0x1]
  %705 = vset.pattern.permute.xlu0 0
  %706 = vperm.xlu0 %705, %v701
  %v707 = vpop.permute.xlu0 %706
  %710 = vset.pattern.permute.xlu0 0
  %711 = vperm.xlu0 %710, %v702
  %v712 = vpop.permute.xlu0 %711
  %v714 = vlaneseq
  %v715 = vshrl.u32 %v714, 7
  %v716 = vsub.s32 0, %v715
  %v717 = vrot.slane %v703, %v716
  %v718 = vmul.f32 %v707, %v717
  %v719 = vmul.f32 %v712, %v717
  %v720 = vadd.f32 %v699, %v718
  %v721 = vadd.f32 %v700, %v719
  %v722 = vld [vmem:[%s1 + $0xf0] sm:$0xff]
  %v723 = vld [vmem:[%s1 + $0xf8] sm:$0xff]
  %v724 = vld [vmem:[#allocation2 + $0xc] sm:$0x1]
  %726 = vset.pattern.permute.xlu0 0
  %727 = vperm.xlu0 %726, %v722
  %v728 = vpop.permute.xlu0 %727
  %731 = vset.pattern.permute.xlu0 0
  %732 = vperm.xlu0 %731, %v723
  %v733 = vpop.permute.xlu0 %732
  %v735 = vlaneseq
  %v736 = vshrl.u32 %v735, 7
  %v737 = vsub.s32 0, %v736
  %v738 = vrot.slane %v724, %v737
  %v739 = vmul.f32 %v728, %v738
  %v740 = vmul.f32 %v733, %v738
  %v741 = vadd.f32 %v720, %v739
  %v742 = vadd.f32 %v721, %v740
  %v743 = vld [vmem:[%s1 + $0x100] sm:$0xff]
  %v744 = vld [vmem:[%s1 + $0x108] sm:$0xff]
  %v745 = vld [vmem:[#allocation2 + $0xd] sm:$0x1]
  %747 = vset.pattern.permute.xlu0 0
  %748 = vperm.xlu0 %747, %v743
  %v749 = vpop.permute.xlu0 %748
  %752 = vset.pattern.permute.xlu0 0
  %753 = vperm.xlu0 %752, %v744
  %v754 = vpop.permute.xlu0 %753
  %v756 = vlaneseq
  %v757 = vshrl.u32 %v756, 7
  %v758 = vsub.s32 0, %v757
  %v759 = vrot.slane %v745, %v758
  %v760 = vmul.f32 %v749, %v759
  %v761 = vmul.f32 %v754, %v759
  %v762 = vadd.f32 %v741, %v760
  %v763 = vadd.f32 %v742, %v761
  %v764 = vld [vmem:[%s1 + $0x110] sm:$0xff]
  %v765 = vld [vmem:[%s1 + $0x118] sm:$0xff]
  %v766 = vld [vmem:[#allocation2 + $0xe] sm:$0x1]
  %768 = vset.pattern.permute.xlu0 0
  %769 = vperm.xlu0 %768, %v764
  %v770 = vpop.permute.xlu0 %769
  %773 = vset.pattern.permute.xlu0 0
  %774 = vperm.xlu0 %773, %v765
  %v775 = vpop.permute.xlu0 %774
  %v777 = vlaneseq
  %v778 = vshrl.u32 %v777, 7
  %v779 = vsub.s32 0, %v778
  %v780 = vrot.slane %v766, %v779
  %v781 = vmul.f32 %v770, %v780
  %v782 = vmul.f32 %v775, %v780
  %v783 = vadd.f32 %v762, %v781
  %v784 = vadd.f32 %v763, %v782
  %v785 = vld [vmem:[%s1 + $0x120] sm:$0xff]
  %v786 = vld [vmem:[%s1 + $0x128] sm:$0xff]
  %v787 = vld [vmem:[#allocation2 + $0xf] sm:$0x1]
  %789 = vset.pattern.permute.xlu0 0
  %790 = vperm.xlu0 %789, %v785
  %v791 = vpop.permute.xlu0 %790
  %794 = vset.pattern.permute.xlu0 0
  %795 = vperm.xlu0 %794, %v786
  %v796 = vpop.permute.xlu0 %795
  %v798 = vlaneseq
  %v799 = vshrl.u32 %v798, 7
  %v800 = vsub.s32 0, %v799
  %v801 = vrot.slane %v787, %v800
  %v802 = vmul.f32 %v791, %v801
  %v803 = vmul.f32 %v796, %v801
  %v804 = vadd.f32 %v783, %v802
  %v805 = vadd.f32 %v784, %v803
  %v806 = vmax.f32 %v804, 0.0
  %v807 = vmax.f32 %v805, 0.0
  %v808 = vmul.f32 %v425, %v806
  %v809 = vmul.f32 %v430, %v807
  %v810 = vadd.f32 %v808, %v809
  %v811 = vrot.slane %v810, 4
  %v812 = vadd.f32 %v810, %v811
  %v813 = vrot.slane %v812, 2
  %v814 = vadd.f32 %v812, %v813
  %v815 = vrot.slane %v814, 1
  %v816 = vadd.f32 %v814, %v815
  %v817 = vadd.f32 %v816, %v444
  %818 = vst [vmem:[%s2 + $0x1] sm:$0x1] %v817
  %v819 = vld [vmem:[%s0 + $0x2] sm:$0x1]
  %v820 = vld [vmem:[%s0 + $0x5] sm:$0x1]
  %v821 = vlaneseq
  %v822 = vshrl.u32 %v821, 7
  %v823 = vsub.s32 0, %v822
  %v824 = vrot.slane %v819, %v823
  %v825 = vmul.f32 %v37, %v824
  %v826 = vmul.f32 %v42, %v824
  %v827 = vlaneseq
  %v828 = vshrl.u32 %v827, 7
  %v829 = vsub.s32 0, %v828
  %v830 = vrot.slane %v820, %v829
  %v831 = vmul.f32 %v53, %v830
  %v832 = vmul.f32 %v58, %v830
  %v833 = vadd.f32 %v825, %v831
  %v834 = vadd.f32 %v826, %v832
  %v835 = vadd.f32 %v833, %v71
  %v836 = vadd.f32 %v834, %v76
  %v837 = vmax.f32 %v835, 0.0
  %v838 = vmax.f32 %v836, 0.0
  %839 = vst [vmem:[#allocation2] sm:$0xff] %v837
  %840 = vst [vmem:[#allocation2 + $0x8] sm:$0xff] %v838
  %v841 = vld [vmem:[%s1 + $0x30] sm:$0xff]
  %v842 = vld [vmem:[%s1 + $0x38] sm:$0xff]
  %v843 = vld [vmem:[#allocation2] sm:$0x1]
  %845 = vset.pattern.permute.xlu0 0
  %846 = vperm.xlu0 %845, %v841
  %v847 = vpop.permute.xlu0 %846
  %850 = vset.pattern.permute.xlu0 0
  %851 = vperm.xlu0 %850, %v842
  %v852 = vpop.permute.xlu0 %851
  %v854 = vlaneseq
  %v855 = vshrl.u32 %v854, 7
  %v856 = vsub.s32 0, %v855
  %v857 = vrot.slane %v843, %v856
  %v858 = vmul.f32 %v847, %v857
  %v859 = vmul.f32 %v852, %v857
  %v860 = vadd.f32 %v25, %v858
  %v861 = vadd.f32 %v30, %v859
  %v862 = vld [vmem:[%s1 + $0x40] sm:$0xff]
  %v863 = vld [vmem:[%s1 + $0x48] sm:$0xff]
  %v864 = vld [vmem:[#allocation2 + $0x1] sm:$0x1]
  %866 = vset.pattern.permute.xlu0 0
  %867 = vperm.xlu0 %866, %v862
  %v868 = vpop.permute.xlu0 %867
  %871 = vset.pattern.permute.xlu0 0
  %872 = vperm.xlu0 %871, %v863
  %v873 = vpop.permute.xlu0 %872
  %v875 = vlaneseq
  %v876 = vshrl.u32 %v875, 7
  %v877 = vsub.s32 0, %v876
  %v878 = vrot.slane %v864, %v877
  %v879 = vmul.f32 %v868, %v878
  %v880 = vmul.f32 %v873, %v878
  %v881 = vadd.f32 %v860, %v879
  %v882 = vadd.f32 %v861, %v880
  %v883 = vld [vmem:[%s1 + $0x50] sm:$0xff]
  %v884 = vld [vmem:[%s1 + $0x58] sm:$0xff]
  %v885 = vld [vmem:[#allocation2 + $0x2] sm:$0x1]
  %887 = vset.pattern.permute.xlu0 0
  %888 = vperm.xlu0 %887, %v883
  %v889 = vpop.permute.xlu0 %888
  %892 = vset.pattern.permute.xlu0 0
  %893 = vperm.xlu0 %892, %v884
  %v894 = vpop.permute.xlu0 %893
  %v896 = vlaneseq
  %v897 = vshrl.u32 %v896, 7
  %v898 = vsub.s32 0, %v897
  %v899 = vrot.slane %v885, %v898
  %v900 = vmul.f32 %v889, %v899
  %v901 = vmul.f32 %v894, %v899
  %v902 = vadd.f32 %v881, %v900
  %v903 = vadd.f32 %v882, %v901
  %v904 = vld [vmem:[%s1 + $0x60] sm:$0xff]
  %v905 = vld [vmem:[%s1 + $0x68] sm:$0xff]
  %v906 = vld [vmem:[#allocation2 + $0x3] sm:$0x1]
  %908 = vset.pattern.permute.xlu0 0
  %909 = vperm.xlu0 %908, %v904
  %v910 = vpop.permute.xlu0 %909
  %913 = vset.pattern.permute.xlu0 0
  %914 = vperm.xlu0 %913, %v905
  %v915 = vpop.permute.xlu0 %914
  %v917 = vlaneseq
  %v918 = vshrl.u32 %v917, 7
  %v919 = vsub.s32 0, %v918
  %v920 = vrot.slane %v906, %v919
  %v921 = vmul.f32 %v910, %v920
  %v922 = vmul.f32 %v915, %v920
  %v923 = vadd.f32 %v902, %v921
  %v924 = vadd.f32 %v903, %v922
  %v925 = vld [vmem:[%s1 + $0x70] sm:$0xff]
  %v926 = vld [vmem:[%s1 + $0x78] sm:$0xff]
  %v927 = vld [vmem:[#allocation2 + $0x4] sm:$0x1]
  %929 = vset.pattern.permute.xlu0 0
  %930 = vperm.xlu0 %929, %v925
  %v931 = vpop.permute.xlu0 %930
  %934 = vset.pattern.permute.xlu0 0
  %935 = vperm.xlu0 %934, %v926
  %v936 = vpop.permute.xlu0 %935
  %v938 = vlaneseq
  %v939 = vshrl.u32 %v938, 7
  %v940 = vsub.s32 0, %v939
  %v941 = vrot.slane %v927, %v940
  %v942 = vmul.f32 %v931, %v941
  %v943 = vmul.f32 %v936, %v941
  %v944 = vadd.f32 %v923, %v942
  %v945 = vadd.f32 %v924, %v943
  %v946 = vld [vmem:[%s1 + $0x80] sm:$0xff]
  %v947 = vld [vmem:[%s1 + $0x88] sm:$0xff]
  %v948 = vld [vmem:[#allocation2 + $0x5] sm:$0x1]
  %950 = vset.pattern.permute.xlu0 0
  %951 = vperm.xlu0 %950, %v946
  %v952 = vpop.permute.xlu0 %951
  %955 = vset.pattern.permute.xlu0 0
  %956 = vperm.xlu0 %955, %v947
  %v957 = vpop.permute.xlu0 %956
  %v959 = vlaneseq
  %v960 = vshrl.u32 %v959, 7
  %v961 = vsub.s32 0, %v960
  %v962 = vrot.slane %v948, %v961
  %v963 = vmul.f32 %v952, %v962
  %v964 = vmul.f32 %v957, %v962
  %v965 = vadd.f32 %v944, %v963
  %v966 = vadd.f32 %v945, %v964
  %v967 = vld [vmem:[%s1 + $0x90] sm:$0xff]
  %v968 = vld [vmem:[%s1 + $0x98] sm:$0xff]
  %v969 = vld [vmem:[#allocation2 + $0x6] sm:$0x1]
  %971 = vset.pattern.permute.xlu0 0
  %972 = vperm.xlu0 %971, %v967
  %v973 = vpop.permute.xlu0 %972
  %976 = vset.pattern.permute.xlu0 0
  %977 = vperm.xlu0 %976, %v968
  %v978 = vpop.permute.xlu0 %977
  %v980 = vlaneseq
  %v981 = vshrl.u32 %v980, 7
  %v982 = vsub.s32 0, %v981
  %v983 = vrot.slane %v969, %v982
  %v984 = vmul.f32 %v973, %v983
  %v985 = vmul.f32 %v978, %v983
  %v986 = vadd.f32 %v965, %v984
  %v987 = vadd.f32 %v966, %v985
  %v988 = vld [vmem:[%s1 + $0xa0] sm:$0xff]
  %v989 = vld [vmem:[%s1 + $0xa8] sm:$0xff]
  %v990 = vld [vmem:[#allocation2 + $0x7] sm:$0x1]
  %992 = vset.pattern.permute.xlu0 0
  %993 = vperm.xlu0 %992, %v988
  %v994 = vpop.permute.xlu0 %993
  %997 = vset.pattern.permute.xlu0 0
  %998 = vperm.xlu0 %997, %v989
  %v999 = vpop.permute.xlu0 %998
  %v1001 = vlaneseq
  %v1002 = vshrl.u32 %v1001, 7
  %v1003 = vsub.s32 0, %v1002
  %v1004 = vrot.slane %v990, %v1003
  %v1005 = vmul.f32 %v994, %v1004
  %v1006 = vmul.f32 %v999, %v1004
  %v1007 = vadd.f32 %v986, %v1005
  %v1008 = vadd.f32 %v987, %v1006
  %v1009 = vld [vmem:[%s1 + $0xb0] sm:$0xff]
  %v1010 = vld [vmem:[%s1 + $0xb8] sm:$0xff]
  %v1011 = vld [vmem:[#allocation2 + $0x8] sm:$0x1]
  %1013 = vset.pattern.permute.xlu0 0
  %1014 = vperm.xlu0 %1013, %v1009
  %v1015 = vpop.permute.xlu0 %1014
  %1018 = vset.pattern.permute.xlu0 0
  %1019 = vperm.xlu0 %1018, %v1010
  %v1020 = vpop.permute.xlu0 %1019
  %v1022 = vlaneseq
  %v1023 = vshrl.u32 %v1022, 7
  %v1024 = vsub.s32 0, %v1023
  %v1025 = vrot.slane %v1011, %v1024
  %v1026 = vmul.f32 %v1015, %v1025
  %v1027 = vmul.f32 %v1020, %v1025
  %v1028 = vadd.f32 %v1007, %v1026
  %v1029 = vadd.f32 %v1008, %v1027
  %v1030 = vld [vmem:[%s1 + $0xc0] sm:$0xff]
  %v1031 = vld [vmem:[%s1 + $0xc8] sm:$0xff]
  %v1032 = vld [vmem:[#allocation2 + $0x9] sm:$0x1]
  %1034 = vset.pattern.permute.xlu0 0
  %1035 = vperm.xlu0 %1034, %v1030
  %v1036 = vpop.permute.xlu0 %1035
  %1039 = vset.pattern.permute.xlu0 0
  %1040 = vperm.xlu0 %1039, %v1031
  %v1041 = vpop.permute.xlu0 %1040
  %v1043 = vlaneseq
  %v1044 = vshrl.u32 %v1043, 7
  %v1045 = vsub.s32 0, %v1044
  %v1046 = vrot.slane %v1032, %v1045
  %v1047 = vmul.f32 %v1036, %v1046
  %v1048 = vmul.f32 %v1041, %v1046
  %v1049 = vadd.f32 %v1028, %v1047
  %v1050 = vadd.f32 %v1029, %v1048
  %v1051 = vld [vmem:[%s1 + $0xd0] sm:$0xff]
  %v1052 = vld [vmem:[%s1 + $0xd8] sm:$0xff]
  %v1053 = vld [vmem:[#allocation2 + $0xa] sm:$0x1]
  %1055 = vset.pattern.permute.xlu0 0
  %1056 = vperm.xlu0 %1055, %v1051
  %v1057 = vpop.permute.xlu0 %1056
  %1060 = vset.pattern.permute.xlu0 0
  %1061 = vperm.xlu0 %1060, %v1052
  %v1062 = vpop.permute.xlu0 %1061
  %v1064 = vlaneseq
  %v1065 = vshrl.u32 %v1064, 7
  %v1066 = vsub.s32 0, %v1065
  %v1067 = vrot.slane %v1053, %v1066
  %v1068 = vmul.f32 %v1057, %v1067
  %v1069 = vmul.f32 %v1062, %v1067
  %v1070 = vadd.f32 %v1049, %v1068
  %v1071 = vadd.f32 %v1050, %v1069
  %v1072 = vld [vmem:[%s1 + $0xe0] sm:$0xff]
  %v1073 = vld [vmem:[%s1 + $0xe8] sm:$0xff]
  %v1074 = vld [vmem:[#allocation2 + $0xb] sm:$0x1]
  %1076 = vset.pattern.permute.xlu0 0
  %1077 = vperm.xlu0 %1076, %v1072
  %v1078 = vpop.permute.xlu0 %1077
  %1081 = vset.pattern.permute.xlu0 0
  %1082 = vperm.xlu0 %1081, %v1073
  %v1083 = vpop.permute.xlu0 %1082
  %v1085 = vlaneseq
  %v1086 = vshrl.u32 %v1085, 7
  %v1087 = vsub.s32 0, %v1086
  %v1088 = vrot.slane %v1074, %v1087
  %v1089 = vmul.f32 %v1078, %v1088
  %v1090 = vmul.f32 %v1083, %v1088
  %v1091 = vadd.f32 %v1070, %v1089
  %v1092 = vadd.f32 %v1071, %v1090
  %v1093 = vld [vmem:[%s1 + $0xf0] sm:$0xff]
  %v1094 = vld [vmem:[%s1 + $0xf8] sm:$0xff]
  %v1095 = vld [vmem:[#allocation2 + $0xc] sm:$0x1]
  %1097 = vset.pattern.permute.xlu0 0
  %1098 = vperm.xlu0 %1097, %v1093
  %v1099 = vpop.permute.xlu0 %1098
  %1102 = vset.pattern.permute.xlu0 0
  %1103 = vperm.xlu0 %1102, %v1094
  %v1104 = vpop.permute.xlu0 %1103
  %v1106 = vlaneseq
  %v1107 = vshrl.u32 %v1106, 7
  %v1108 = vsub.s32 0, %v1107
  %v1109 = vrot.slane %v1095, %v1108
  %v1110 = vmul.f32 %v1099, %v1109
  %v1111 = vmul.f32 %v1104, %v1109
  %v1112 = vadd.f32 %v1091, %v1110
  %v1113 = vadd.f32 %v1092, %v1111
  %v1114 = vld [vmem:[%s1 + $0x100] sm:$0xff]
  %v1115 = vld [vmem:[%s1 + $0x108] sm:$0xff]
  %v1116 = vld [vmem:[#allocation2 + $0xd] sm:$0x1]
  %1118 = vset.pattern.permute.xlu0 0
  %1119 = vperm.xlu0 %1118, %v1114
  %v1120 = vpop.permute.xlu0 %1119
  %1123 = vset.pattern.permute.xlu0 0
  %1124 = vperm.xlu0 %1123, %v1115
  %v1125 = vpop.permute.xlu0 %1124
  %v1127 = vlaneseq
  %v1128 = vshrl.u32 %v1127, 7
  %v1129 = vsub.s32 0, %v1128
  %v1130 = vrot.slane %v1116, %v1129
  %v1131 = vmul.f32 %v1120, %v1130
  %v1132 = vmul.f32 %v1125, %v1130
  %v1133 = vadd.f32 %v1112, %v1131
  %v1134 = vadd.f32 %v1113, %v1132
  %v1135 = vld [vmem:[%s1 + $0x110] sm:$0xff]
  %v1136 = vld [vmem:[%s1 + $0x118] sm:$0xff]
  %v1137 = vld [vmem:[#allocation2 + $0xe] sm:$0x1]
  %1139 = vset.pattern.permute.xlu0 0
  %1140 = vperm.xlu0 %1139, %v1135
  %v1141 = vpop.permute.xlu0 %1140
  %1144 = vset.pattern.permute.xlu0 0
  %1145 = vperm.xlu0 %1144, %v1136
  %v1146 = vpop.permute.xlu0 %1145
  %v1148 = vlaneseq
  %v1149 = vshrl.u32 %v1148, 7
  %v1150 = vsub.s32 0, %v1149
  %v1151 = vrot.slane %v1137, %v1150
  %v1152 = vmul.f32 %v1141, %v1151
  %v1153 = vmul.f32 %v1146, %v1151
  %v1154 = vadd.f32 %v1133, %v1152
  %v1155 = vadd.f32 %v1134, %v1153
  %v1156 = vld [vmem:[%s1 + $0x120] sm:$0xff]
  %v1157 = vld [vmem:[%s1 + $0x128] sm:$0xff]
  %v1158 = vld [vmem:[#allocation2 + $0xf] sm:$0x1]
  %1160 = vset.pattern.permute.xlu0 0
  %1161 = vperm.xlu0 %1160, %v1156
  %v1162 = vpop.permute.xlu0 %1161
  %1165 = vset.pattern.permute.xlu0 0
  %1166 = vperm.xlu0 %1165, %v1157
  %v1167 = vpop.permute.xlu0 %1166
  %v1169 = vlaneseq
  %v1170 = vshrl.u32 %v1169, 7
  %v1171 = vsub.s32 0, %v1170
  %v1172 = vrot.slane %v1158, %v1171
  %v1173 = vmul.f32 %v1162, %v1172
  %v1174 = vmul.f32 %v1167, %v1172
  %v1175 = vadd.f32 %v1154, %v1173
  %v1176 = vadd.f32 %v1155, %v1174
  %v1177 = vmax.f32 %v1175, 0.0
  %v1178 = vmax.f32 %v1176, 0.0
  %v1179 = vmul.f32 %v425, %v1177
  %v1180 = vmul.f32 %v430, %v1178
  %v1181 = vadd.f32 %v1179, %v1180
  %v1182 = vrot.slane %v1181, 4
  %v1183 = vadd.f32 %v1181, %v1182
  %v1184 = vrot.slane %v1183, 2
  %v1185 = vadd.f32 %v1183, %v1184
  %v1186 = vrot.slane %v1185, 1
  %v1187 = vadd.f32 %v1185, %v1186
  %v1188 = vadd.f32 %v1187, %v444
  %1189 = vst [vmem:[%s2 + $0x2] sm:$0x1] %v1188
  // Predicated region
  $region10: #{splitted_model2_forward.1} parent=0 // pred_check
    _
  $region11: #{splitted_model2_forward.1} parent=0 // pred_check_branch
    %1191 = sbr.rel (0) target = $region13
  $region12: #{splitted_model2_forward.1} parent=0 // pred_region
    _
  $region13: #{splitted_model2_forward.1} parent=0 // pred_fallthru
    _
  // Predicated region
  $region14: #{splitted_model2_forward.1} parent=0 // pred_check
    _
  $region15: #{splitted_model2_forward.1} parent=0 // pred_check_branch
    %1193 = sbr.rel (0) target = $region17
  $region16: #{splitted_model2_forward.1} parent=0 // pred_region
    _
  $region17: #{splitted_model2_forward.1} parent=0 // pred_fallthru
    _

</llo_original>
